<compile_context>
chip_gen: v7x
topology: tpu7x:2x2x1
jax: 0.10.0
libtpu: 0.0.40
codegen_flags: <defaults>
</compile_context>

<pallas_src>
import numpy as np
import jax
import jax.numpy as jnp
from jax import lax
from jax.experimental import pallas as pl
from jax.experimental.pallas import tpu as pltpu


def _round_up(x, m):
    return ((x + m - 1) // m) * m


def _const_index_map(ndim):
    zeros = (0,) * ndim
    return lambda i: zeros


# Tap enumeration order shared by kernel (shifted loads) and host weight packing.
_TAPS = tuple((di, dj) for di in (-1, 0, 1) for dj in (-1, 0, 1))


# -----------------------------------------------------------------------------
# Host-side constants
# -----------------------------------------------------------------------------
def _build_edge_masks(h, w):
    """(2, h*w) f32 masks over output pixel positions for the horizontal taps.

    row 0: dj = -1 (zero where w == 0); row 1: dj = +1 (zero where w == W-1).
    Vertical out-of-bounds taps are handled by the zero margin in the VMEM scratch.
    """
    m = np.ones((2, h * w), np.float32)
    for hh in range(h):
        m[0, hh * w + 0] = 0.0
        m[1, hh * w + (w - 1)] = 0.0
    return jnp.asarray(m)


def _build_downsample(h, w, stride):
    """(h*w, h_out*w_out) exact 0/1 f32 selector: column (ho*w_out + wo) picks the
    full-resolution conv output at input position (stride*ho, stride*wo)."""
    h_out = (h - 1) // stride + 1
    w_out = (w - 1) // stride + 1
    sel = np.zeros((h * w, h_out * w_out), np.float32)
    for ho in range(h_out):
        for wo in range(w_out):
            sel[(stride * ho) * w + (stride * wo), ho * w_out + wo] = 1.0
    return jnp.asarray(sel), (h_out, w_out)


# -----------------------------------------------------------------------------
# Fused backbone kernel: whole layer chain for one image per grid step
# -----------------------------------------------------------------------------
def _build_backbone_kernel(layer_infos, n_masks, n_ds):
    n_layers = len(layer_infos)

    def kernel(*refs):
        x_ref = refs[0]
        mask_refs = refs[1:1 + n_masks]
        ds_refs = refs[1 + n_masks:1 + n_masks + n_ds]
        wb_refs = refs[1 + n_masks + n_ds:1 + n_masks + n_ds + 2 * n_layers]
        rest = refs[1 + n_masks + n_ds + 2 * n_layers:]
        out_refs, pad_ref = rest[:-1], rest[-1]

        # Activations: (C_pad, H*W) f32 -- flattened spatial on the 128-lane axis.
        x = x_ref[0]
        oi = 0
        prev_footprint = None
        for li, info in enumerate(layer_infos):
            cin_pad, w_in, m_in = info["cin_pad"], info["w_in"], info["m_in"]
            margin = w_in + 1
            w_used = m_in + 2 * margin
            w_ref = wb_refs[2 * li]        # (Cout, 9*Cin_pad) f32, tap-major
            b_ref = wb_refs[2 * li + 1]    # (Cout, 1) f32
            mask_ref = mask_refs[info["mask_idx"]]   # (2, M_in) f32

            # Stage activations into a zero-margined scratch: vertical 3x3-tap
            # out-of-bounds reads then land in the zero margin for free.
            if prev_footprint != (cin_pad, w_used):
                pad_ref[0:cin_pad, 0:w_used] = jnp.zeros((cin_pad, w_used),
                                                         jnp.float32)
            prev_footprint = (cin_pad, w_used)
            pad_ref[0:cin_pad, margin:margin + m_in] = x

            # Gather the 9 conv taps as shifted lane-slices (no im2col matmuls);
            # horizontal wrap is killed with a tiny 0/1 mask multiply (6 of 9 taps).
            taps = []
            for k, (di, dj) in enumerate(_TAPS):
                off = margin + di * w_in + dj           # static, >= 0
                tap = pad_ref[0:cin_pad, off:off + m_in]
                if dj == -1:
                    tap = tap * mask_ref[0:1, :]
                elif dj == 1:
                    tap = tap * mask_ref[1:2, :]
                taps.append(tap)
            taps = jnp.concatenate(taps, axis=0)        # (9*Cin_pad, M_in)

            # ONE deep-K MXU matmul per layer: (Cout, 9*Cin_pad) @ (9*Cin_pad, M_in).
            y = jnp.dot(w_ref[...], taps, preferred_element_type=jnp.float32)

            if info["ds_idx"] is not None:
                # stride-2: single exact 0/1 downsample matmul (M_in -> M_out).
                y = jnp.dot(y, ds_refs[info["ds_idx"]][...],
                            preferred_element_type=jnp.float32)

            y = jnp.maximum(y + b_ref[...], 0.0)        # fused bias + ReLU (f32)

            if info["extract"]:
                out_refs[oi][0] = y                     # (Cout, M_out) f32
                oi += 1
            x = y

    return kernel


# -----------------------------------------------------------------------------
# NetworkFeatureAggregator analog ('resnet' mode)
# -----------------------------------------------------------------------------
class NetworkFeatureAggregatorPallas:
    """Runs the synthetic backbone only up to the last extracted layer and returns a
    dict of intermediate features (NCHW), mirroring the forward-hook logic."""

    _ORDER = ("conv1", "layer1", "layer2", "layer3")
    _STRIDES = {"conv1": 1, "layer1": 1, "layer2": 2, "layer3": 2}

    def __init__(self, params, layers_to_extract_from, input_hw=(16, 16), in_channels=3):
        self.layers_to_extract_from = list(layers_to_extract_from)
        self.input_hw = tuple(input_hw)
        self.in_channels = in_channels

        last = self.layers_to_extract_from[-1]
        h, w = self.input_hw
        cin = in_channels
        cin_pad = _round_up(cin, 8)         # f32 sublane granularity
        self._cin_pad0 = cin_pad

        mask_arrays, mask_cache = [], {}
        ds_arrays, ds_cache = [], {}
        layer_infos, weight_ops, extracted = [], [], []
        self._extract_shapes = {}
        flops_per_image = 0

        for name in self._ORDER:
            stride = self._STRIDES[name]
            if (h, w) not in mask_cache:
                mask_cache[(h, w)] = len(mask_arrays)
                mask_arrays.append(_build_edge_masks(h, w))
            mask_idx = mask_cache[(h, w)]

            if stride > 1:
                if (h, w, stride) not in ds_cache:
                    sel, _ = _build_downsample(h, w, stride)
                    ds_cache[(h, w, stride)] = len(ds_arrays)
                    ds_arrays.append(sel)
                ds_idx = ds_cache[(h, w, stride)]
            else:
                ds_idx = None
            ho = (h - 1) // stride + 1
            wo = (w - 1) // stride + 1

            w_hwio, bias = params[name]
            w_np = np.asarray(w_hwio, np.float32)
            cout = int(w_np.shape[-1])
            assert cout % 8 == 0, "synthetic backbone uses sublane-aligned widths"
            # (3,3,Cin,Cout) -> (Cout, 9*Cin_pad), tap-major (matches kernel order);
            # padded Cin columns are zero.
            w_pack = np.zeros((cout, 9 * cin_pad), np.float32)
            for k, (di, dj) in enumerate(_TAPS):
                w_pack[:, k * cin_pad:k * cin_pad + cin] = w_np[di + 1, dj + 1].T
            weight_ops.append(jnp.asarray(w_pack))
            weight_ops.append(jnp.asarray(np.asarray(bias, np.float32).reshape(cout, 1)))

            extract = name in self.layers_to_extract_from
            layer_infos.append(dict(mask_idx=mask_idx, ds_idx=ds_idx,
                                    cin_pad=cin_pad, cout=cout,
                                    h_in=h, w_in=w, m_in=h * w,
                                    m_out=ho * wo, extract=extract))
            if extract:
                extracted.append(name)
                self._extract_shapes[name] = (cout, ho, wo)

            flops_per_image += 2 * cout * 9 * cin_pad * (h * w)
            if ds_idx is not None:
                flops_per_image += 2 * cout * (h * w) * (ho * wo)

            h, w, cin, cin_pad = ho, wo, cout, cout
            if name == last:   # mimics LastLayerToExtractReachedException: stop early
                break

        self._mask_arrays = tuple(mask_arrays)
        self._ds_arrays = tuple(ds_arrays)
        self._weight_ops = tuple(weight_ops)
        self._layer_infos = tuple(layer_infos)
        self._extracted_names = tuple(extracted)
        self._flops_per_image = int(flops_per_image)
        self._const_bytes = int(sum(int(np.prod(a.shape)) * 4
                                    for a in (*mask_arrays, *ds_arrays, *weight_ops)))
        self._scratch_rows = max(li["cin_pad"] for li in layer_infos)
        self._scratch_cols = _round_up(
            max(li["m_in"] + 2 * (li["w_in"] + 1) for li in layer_infos), 128)
        self._kernel = _build_backbone_kernel(self._layer_infos,
                                              len(self._mask_arrays),
                                              len(self._ds_arrays))
        self._forward = jax.jit(self._forward_impl)

    def _forward_impl(self, images_nchw):
        n, c, h, w = images_nchw.shape
        x = images_nchw.reshape(n, c, h * w)            # NCHW -> (N, C, H*W)
        if self._cin_pad0 > c:                          # pad channels to sublane tile
            x = jnp.pad(x, ((0, 0), (0, self._cin_pad0 - c), (0, 0)))
        cp0 = self._cin_pad0

        in_specs = [pl.BlockSpec((1, cp0, h * w), lambda i: (i, 0, 0))]
        operands = [x]
        for arr in (*self._mask_arrays, *self._ds_arrays, *self._weight_ops):
            in_specs.append(pl.BlockSpec(arr.shape, _const_index_map(arr.ndim)))
            operands.append(arr)

        out_shapes, out_specs = [], []
        for name in self._extracted_names:
            cout, ho, wo = self._extract_shapes[name]
            out_shapes.append(jax.ShapeDtypeStruct((n, cout, ho * wo), jnp.float32))
            out_specs.append(pl.BlockSpec((1, cout, ho * wo), lambda i: (i, 0, 0)))

        out_bytes = sum(int(np.prod(s.shape)) * 4 for s in out_shapes)
        cost = pl.CostEstimate(
            flops=self._flops_per_image * n,
            transcendentals=0,
            bytes_accessed=self._const_bytes + n * cp0 * h * w * 4 + out_bytes)

        outs = pl.pallas_call(
            self._kernel,
            out_shape=tuple(out_shapes),
            grid_spec=pltpu.PrefetchScalarGridSpec(
                num_scalar_prefetch=0,
                grid=(n,),                               # one image per grid step
                in_specs=in_specs,
                out_specs=out_specs,
                scratch_shapes=[pltpu.VMEM(
                    (self._scratch_rows, self._scratch_cols), jnp.float32)]),
            compiler_params=pltpu.CompilerParams(
                dimension_semantics=("parallel",),       # batch feeds both v7x TCs
                vmem_limit_bytes=32 * 1024 * 1024),
            cost_estimate=cost,
        )(*operands)
        if not isinstance(outs, (list, tuple)):
            outs = (outs,)

        result = {}
        for name, arr in zip(self._extracted_names, outs):
            cout, ho, wo = self._extract_shapes[name]
            result[name] = arr.reshape(n, cout, ho, wo)  # back to NCHW
        return result

    def __call__(self, images_nchw):
        n, c, h, w = images_nchw.shape
        assert (h, w) == self.input_hw and c == self.in_channels
        return self._forward(images_nchw)

    def feature_dimensions(self, input_shape):
        _input = jnp.ones((1,) + tuple(input_shape), jnp.float32)
        _output = self(_input)
        return [_output[layer].shape[1] for layer in self.layers_to_extract_from]


# -----------------------------------------------------------------------------
# Reference (pure JAX, f32) for validation
# -----------------------------------------------------------------------------
def _ref_forward(params, images_nchw, layers):
    x = images_nchw
    outs = {}
    for name in NetworkFeatureAggregatorPallas._ORDER:
        w, b = params[name]
        s = NetworkFeatureAggregatorPallas._STRIDES[name]
        y = lax.conv_general_dilated(
            x, w, window_strides=(s, s), padding=((1, 1), (1, 1)),
            dimension_numbers=("NCHW", "HWIO", "NCHW"),
            precision=lax.Precision.HIGHEST)
        x = jnp.maximum(y + b[None, :, None, None], 0.0)
        if name in layers:
            outs[name] = x
        if name == layers[-1]:
            break
    return outs


# -----------------------------------------------------------------------------
if __name__ == "__main__":
    key = jax.random.PRNGKey(0)
    k_img, k_w = jax.random.split(key)

    # Synthetic backbone parameters (HWIO weights), deterministic init.
    layer_defs = {            # name: (cin, cout)
        "conv1": (3, 8),
        "layer1": (8, 8),
        "layer2": (8, 16),
        "layer3": (16, 32),
    }
    params = {}
    wkeys = jax.random.split(k_w, len(layer_defs) * 2)
    for idx, (name, (cin, cout)) in enumerate(layer_defs.items()):
        wgt = 0.1 * jax.random.normal(wkeys[2 * idx], (3, 3, cin, cout), jnp.float32)
        b = 0.05 * jax.random.normal(wkeys[2 * idx + 1], (cout,), jnp.float32)
        params[name] = (wgt, b)

    layers_to_extract_from = ["layer2", "layer3"]
    aggregator = NetworkFeatureAggregatorPallas(
        params, layers_to_extract_from, input_hw=(16, 16), in_channels=3)

    # Input images, NCHW like PyTorch: (batch=2, channels=3, 16, 16)
    images = jax.random.normal(k_img, (2, 3, 16, 16), jnp.float32)

    feats = aggregator(images)
    jax.block_until_ready(feats)

    # Validate against the f32 reference conv.
    ref = _ref_forward(params, images, layers_to_extract_from)
    for name in layers_to_extract_from:
        assert feats[name].shape == ref[name].shape, (feats[name].shape, ref[name].shape)
        assert jnp.allclose(feats[name], ref[name], atol=2e-2, rtol=2e-2), (
            name, float(jnp.max(jnp.abs(feats[name] - ref[name]))))

    # feature_dimensions analog (channel dims of extracted layers)
    dims = aggregator.feature_dimensions((3, 16, 16))
    assert dims == [16, 32], dims

    print("KERNEL_OK")
</pallas_src>

<mosaic_0001>
module attributes {stable_mosaic.version = 11 : i64} {
  func.func @kernel(%arg0: i32, %arg1: memref<1x8x256xf32, #tpu.memory_space<vmem>>, %arg2: memref<2x256xf32, #tpu.memory_space<vmem>>, %arg3: memref<2x64xf32, #tpu.memory_space<vmem>>, %arg4: memref<256x64xf32, #tpu.memory_space<vmem>>, %arg5: memref<64x16xf32, #tpu.memory_space<vmem>>, %arg6: memref<8x72xf32, #tpu.memory_space<vmem>>, %arg7: memref<8x1xf32, #tpu.memory_space<vmem>>, %arg8: memref<8x72xf32, #tpu.memory_space<vmem>>, %arg9: memref<8x1xf32, #tpu.memory_space<vmem>>, %arg10: memref<16x72xf32, #tpu.memory_space<vmem>>, %arg11: memref<16x1xf32, #tpu.memory_space<vmem>>, %arg12: memref<32x144xf32, #tpu.memory_space<vmem>>, %arg13: memref<32x1xf32, #tpu.memory_space<vmem>>, %arg14: memref<1x16x64xf32, #tpu.memory_space<vmem>>, %arg15: memref<1x32x16xf32, #tpu.memory_space<vmem>>, %arg16: memref<16x384xf32, #tpu.memory_space<vmem>>) attributes {dimension_semantics = [#tpu.dimension_semantics<parallel>], iteration_bounds = array<i64: 2>, scalar_prefetch = 0 : i64, scratch_operands = 1 : i64, tpu.core_type = #tpu.core_type<tc>, window_params = [{transform_indices = @transform_0, window_bounds = array<i64: 1, 8, 256>}, {pipeline_mode = #tpu.pipeline_mode<synchronous>, transform_indices = @transform_1, window_bounds = array<i64: 2, 256>}, {pipeline_mode = #tpu.pipeline_mode<synchronous>, transform_indices = @transform_2, window_bounds = array<i64: 2, 64>}, {pipeline_mode = #tpu.pipeline_mode<synchronous>, transform_indices = @transform_3, window_bounds = array<i64: 256, 64>}, {pipeline_mode = #tpu.pipeline_mode<synchronous>, transform_indices = @transform_4, window_bounds = array<i64: 64, 16>}, {pipeline_mode = #tpu.pipeline_mode<synchronous>, transform_indices = @transform_5, window_bounds = array<i64: 8, 72>}, {pipeline_mode = #tpu.pipeline_mode<synchronous>, transform_indices = @transform_6, window_bounds = array<i64: 8, 1>}, {pipeline_mode = #tpu.pipeline_mode<synchronous>, transform_indices = @transform_7, window_bounds = array<i64: 8, 72>}, {pipeline_mode = #tpu.pipeline_mode<synchronous>, transform_indices = @transform_8, window_bounds = array<i64: 8, 1>}, {pipeline_mode = #tpu.pipeline_mode<synchronous>, transform_indices = @transform_9, window_bounds = array<i64: 16, 72>}, {pipeline_mode = #tpu.pipeline_mode<synchronous>, transform_indices = @transform_10, window_bounds = array<i64: 16, 1>}, {pipeline_mode = #tpu.pipeline_mode<synchronous>, transform_indices = @transform_11, window_bounds = array<i64: 32, 144>}, {pipeline_mode = #tpu.pipeline_mode<synchronous>, transform_indices = @transform_12, window_bounds = array<i64: 32, 1>}, {transform_indices = @transform_13, window_bounds = array<i64: 1, 16, 64>}, {transform_indices = @transform_14, window_bounds = array<i64: 1, 32, 16>}]} {
    %c0 = arith.constant 0 : index
    %c0_0 = arith.constant 0 : index
    %c0_1 = arith.constant 0 : index
    %0 = vector.load %arg1[%c0, %c0_0, %c0_1] : memref<1x8x256xf32, #tpu.memory_space<vmem>>, vector<1x8x256xf32>
    %1 = vector.shape_cast %0 : vector<1x8x256xf32> to vector<8x256xf32>
    %cst = arith.constant 0.000000e+00 : f32
    %2 = vector.broadcast %cst : f32 to vector<8x290xf32>
    %c0_2 = arith.constant 0 : index
    %c0_3 = arith.constant 0 : index
    %3 = vector.load %arg16[%c0_2, %c0_3] : memref<16x384xf32, #tpu.memory_space<vmem>>, vector<8x290xf32>
    tpu.vector_store %arg16[%c0_2, %c0_3], %2 {strides = array<i32>} : memref<16x384xf32, #tpu.memory_space<vmem>>, vector<8x290xf32>,
    %c0_4 = arith.constant 0 : index
    %c17 = arith.constant 17 : index
    %4 = vector.load %arg16[%c0_4, %c17] : memref<16x384xf32, #tpu.memory_space<vmem>>, vector<8x256xf32>
    tpu.vector_store %arg16[%c0_4, %c17], %1 {strides = array<i32>} : memref<16x384xf32, #tpu.memory_space<vmem>>, vector<8x256xf32>,
    %c0_5 = arith.constant 0 : index
    %c0_6 = arith.constant 0 : index
    %5 = vector.load %arg16[%c0_5, %c0_6] : memref<16x384xf32, #tpu.memory_space<vmem>>, vector<8x256xf32>
    %c0_7 = arith.constant 0 : index
    %c0_8 = arith.constant 0 : index
    %6 = vector.load %arg2[%c0_7, %c0_8] : memref<2x256xf32, #tpu.memory_space<vmem>>, vector<1x256xf32>
    %7 = vector.broadcast %6 : vector<1x256xf32> to vector<8x256xf32>
    %8 = arith.mulf %5, %7 : vector<8x256xf32>
    %c0_9 = arith.constant 0 : index
    %c1 = arith.constant 1 : index
    %9 = vector.load %arg16[%c0_9, %c1] : memref<16x384xf32, #tpu.memory_space<vmem>>, vector<8x256xf32>
    %c0_10 = arith.constant 0 : index
    %c2 = arith.constant 2 : index
    %10 = vector.load %arg16[%c0_10, %c2] : memref<16x384xf32, #tpu.memory_space<vmem>>, vector<8x256xf32>
    %c1_11 = arith.constant 1 : index
    %c0_12 = arith.constant 0 : index
    %11 = vector.load %arg2[%c1_11, %c0_12] : memref<2x256xf32, #tpu.memory_space<vmem>>, vector<1x256xf32>
    %12 = vector.broadcast %11 : vector<1x256xf32> to vector<8x256xf32>
    %13 = arith.mulf %10, %12 : vector<8x256xf32>
    %c0_13 = arith.constant 0 : index
    %c16 = arith.constant 16 : index
    %14 = vector.load %arg16[%c0_13, %c16] : memref<16x384xf32, #tpu.memory_space<vmem>>, vector<8x256xf32>
    %c0_14 = arith.constant 0 : index
    %c0_15 = arith.constant 0 : index
    %15 = vector.load %arg2[%c0_14, %c0_15] : memref<2x256xf32, #tpu.memory_space<vmem>>, vector<1x256xf32>
    %16 = vector.broadcast %15 : vector<1x256xf32> to vector<8x256xf32>
    %17 = arith.mulf %14, %16 : vector<8x256xf32>
    %c0_16 = arith.constant 0 : index
    %c17_17 = arith.constant 17 : index
    %18 = vector.load %arg16[%c0_16, %c17_17] : memref<16x384xf32, #tpu.memory_space<vmem>>, vector<8x256xf32>
    %c0_18 = arith.constant 0 : index
    %c18 = arith.constant 18 : index
    %19 = vector.load %arg16[%c0_18, %c18] : memref<16x384xf32, #tpu.memory_space<vmem>>, vector<8x256xf32>
    %c1_19 = arith.constant 1 : index
    %c0_20 = arith.constant 0 : index
    %20 = vector.load %arg2[%c1_19, %c0_20] : memref<2x256xf32, #tpu.memory_space<vmem>>, vector<1x256xf32>
    %21 = vector.broadcast %20 : vector<1x256xf32> to vector<8x256xf32>
    %22 = arith.mulf %19, %21 : vector<8x256xf32>
    %c0_21 = arith.constant 0 : index
    %c32 = arith.constant 32 : index
    %23 = vector.load %arg16[%c0_21, %c32] : memref<16x384xf32, #tpu.memory_space<vmem>>, vector<8x256xf32>
    %c0_22 = arith.constant 0 : index
    %c0_23 = arith.constant 0 : index
    %24 = vector.load %arg2[%c0_22, %c0_23] : memref<2x256xf32, #tpu.memory_space<vmem>>, vector<1x256xf32>
    %25 = vector.broadcast %24 : vector<1x256xf32> to vector<8x256xf32>
    %26 = arith.mulf %23, %25 : vector<8x256xf32>
    %c0_24 = arith.constant 0 : index
    %c33 = arith.constant 33 : index
    %27 = vector.load %arg16[%c0_24, %c33] : memref<16x384xf32, #tpu.memory_space<vmem>>, vector<8x256xf32>
    %c0_25 = arith.constant 0 : index
    %c34 = arith.constant 34 : index
    %28 = vector.load %arg16[%c0_25, %c34] : memref<16x384xf32, #tpu.memory_space<vmem>>, vector<8x256xf32>
    %c1_26 = arith.constant 1 : index
    %c0_27 = arith.constant 0 : index
    %29 = vector.load %arg2[%c1_26, %c0_27] : memref<2x256xf32, #tpu.memory_space<vmem>>, vector<1x256xf32>
    %30 = vector.broadcast %29 : vector<1x256xf32> to vector<8x256xf32>
    %31 = arith.mulf %28, %30 : vector<8x256xf32>
    %32 = tpu.concatenate %8, %9, %13, %17, %18, %22, %26, %27, %31 in 0 : vector<8x256xf32>, vector<8x256xf32>, vector<8x256xf32>, vector<8x256xf32>, vector<8x256xf32>, vector<8x256xf32>, vector<8x256xf32>, vector<8x256xf32>, vector<8x256xf32> -> vector<72x256xf32>
    %c0_28 = arith.constant 0 : index
    %c0_29 = arith.constant 0 : index
    %33 = vector.load %arg6[%c0_28, %c0_29] : memref<8x72xf32, #tpu.memory_space<vmem>>, vector<8x72xf32>
    %cst_30 = arith.constant dense<0.000000e+00> : vector<8x256xf32>
    %34 = tpu.matmul %33, %32, %cst_30 {dimension_numbers = #tpu.dot_dimension_numbers<[1], [0], [0], [1], [0, 0, 1, 1], [], []>} : vector<8x72xf32>, vector<72x256xf32>, vector<8x256xf32> -> vector<8x256xf32>
    %c0_31 = arith.constant 0 : index
    %c0_32 = arith.constant 0 : index
    %35 = vector.load %arg7[%c0_31, %c0_32] : memref<8x1xf32, #tpu.memory_space<vmem>>, vector<8x1xf32>
    %36 = vector.broadcast %35 : vector<8x1xf32> to vector<8x256xf32>
    %37 = arith.addf %34, %36 : vector<8x256xf32>
    %cst_33 = arith.constant 0.000000e+00 : f32
    %38 = vector.broadcast %cst_33 : f32 to vector<8x256xf32>
    %39 = arith.maximumf %37, %38 : vector<8x256xf32>
    %c0_34 = arith.constant 0 : index
    %c17_35 = arith.constant 17 : index
    %40 = vector.load %arg16[%c0_34, %c17_35] : memref<16x384xf32, #tpu.memory_space<vmem>>, vector<8x256xf32>
    tpu.vector_store %arg16[%c0_34, %c17_35], %39 {strides = array<i32>} : memref<16x384xf32, #tpu.memory_space<vmem>>, vector<8x256xf32>,
    %c0_36 = arith.constant 0 : index
    %c0_37 = arith.constant 0 : index
    %41 = vector.load %arg16[%c0_36, %c0_37] : memref<16x384xf32, #tpu.memory_space<vmem>>, vector<8x256xf32>
    %c0_38 = arith.constant 0 : index
    %c0_39 = arith.constant 0 : index
    %42 = vector.load %arg2[%c0_38, %c0_39] : memref<2x256xf32, #tpu.memory_space<vmem>>, vector<1x256xf32>
    %43 = vector.broadcast %42 : vector<1x256xf32> to vector<8x256xf32>
    %44 = arith.mulf %41, %43 : vector<8x256xf32>
    %c0_40 = arith.constant 0 : index
    %c1_41 = arith.constant 1 : index
    %45 = vector.load %arg16[%c0_40, %c1_41] : memref<16x384xf32, #tpu.memory_space<vmem>>, vector<8x256xf32>
    %c0_42 = arith.constant 0 : index
    %c2_43 = arith.constant 2 : index
    %46 = vector.load %arg16[%c0_42, %c2_43] : memref<16x384xf32, #tpu.memory_space<vmem>>, vector<8x256xf32>
    %c1_44 = arith.constant 1 : index
    %c0_45 = arith.constant 0 : index
    %47 = vector.load %arg2[%c1_44, %c0_45] : memref<2x256xf32, #tpu.memory_space<vmem>>, vector<1x256xf32>
    %48 = vector.broadcast %47 : vector<1x256xf32> to vector<8x256xf32>
    %49 = arith.mulf %46, %48 : vector<8x256xf32>
    %c0_46 = arith.constant 0 : index
    %c16_47 = arith.constant 16 : index
    %50 = vector.load %arg16[%c0_46, %c16_47] : memref<16x384xf32, #tpu.memory_space<vmem>>, vector<8x256xf32>
    %c0_48 = arith.constant 0 : index
    %c0_49 = arith.constant 0 : index
    %51 = vector.load %arg2[%c0_48, %c0_49] : memref<2x256xf32, #tpu.memory_space<vmem>>, vector<1x256xf32>
    %52 = vector.broadcast %51 : vector<1x256xf32> to vector<8x256xf32>
    %53 = arith.mulf %50, %52 : vector<8x256xf32>
    %c0_50 = arith.constant 0 : index
    %c17_51 = arith.constant 17 : index
    %54 = vector.load %arg16[%c0_50, %c17_51] : memref<16x384xf32, #tpu.memory_space<vmem>>, vector<8x256xf32>
    %c0_52 = arith.constant 0 : index
    %c18_53 = arith.constant 18 : index
    %55 = vector.load %arg16[%c0_52, %c18_53] : memref<16x384xf32, #tpu.memory_space<vmem>>, vector<8x256xf32>
    %c1_54 = arith.constant 1 : index
    %c0_55 = arith.constant 0 : index
    %56 = vector.load %arg2[%c1_54, %c0_55] : memref<2x256xf32, #tpu.memory_space<vmem>>, vector<1x256xf32>
    %57 = vector.broadcast %56 : vector<1x256xf32> to vector<8x256xf32>
    %58 = arith.mulf %55, %57 : vector<8x256xf32>
    %c0_56 = arith.constant 0 : index
    %c32_57 = arith.constant 32 : index
    %59 = vector.load %arg16[%c0_56, %c32_57] : memref<16x384xf32, #tpu.memory_space<vmem>>, vector<8x256xf32>
    %c0_58 = arith.constant 0 : index
    %c0_59 = arith.constant 0 : index
    %60 = vector.load %arg2[%c0_58, %c0_59] : memref<2x256xf32, #tpu.memory_space<vmem>>, vector<1x256xf32>
    %61 = vector.broadcast %60 : vector<1x256xf32> to vector<8x256xf32>
    %62 = arith.mulf %59, %61 : vector<8x256xf32>
    %c0_60 = arith.constant 0 : index
    %c33_61 = arith.constant 33 : index
    %63 = vector.load %arg16[%c0_60, %c33_61] : memref<16x384xf32, #tpu.memory_space<vmem>>, vector<8x256xf32>
    %c0_62 = arith.constant 0 : index
    %c34_63 = arith.constant 34 : index
    %64 = vector.load %arg16[%c0_62, %c34_63] : memref<16x384xf32, #tpu.memory_space<vmem>>, vector<8x256xf32>
    %c1_64 = arith.constant 1 : index
    %c0_65 = arith.constant 0 : index
    %65 = vector.load %arg2[%c1_64, %c0_65] : memref<2x256xf32, #tpu.memory_space<vmem>>, vector<1x256xf32>
    %66 = vector.broadcast %65 : vector<1x256xf32> to vector<8x256xf32>
    %67 = arith.mulf %64, %66 : vector<8x256xf32>
    %68 = tpu.concatenate %44, %45, %49, %53, %54, %58, %62, %63, %67 in 0 : vector<8x256xf32>, vector<8x256xf32>, vector<8x256xf32>, vector<8x256xf32>, vector<8x256xf32>, vector<8x256xf32>, vector<8x256xf32>, vector<8x256xf32>, vector<8x256xf32> -> vector<72x256xf32>
    %c0_66 = arith.constant 0 : index
    %c0_67 = arith.constant 0 : index
    %69 = vector.load %arg8[%c0_66, %c0_67] : memref<8x72xf32, #tpu.memory_space<vmem>>, vector<8x72xf32>
    %cst_68 = arith.constant dense<0.000000e+00> : vector<8x256xf32>
    %70 = tpu.matmul %69, %68, %cst_68 {dimension_numbers = #tpu.dot_dimension_numbers<[1], [0], [0], [1], [0, 0, 1, 1], [], []>} : vector<8x72xf32>, vector<72x256xf32>, vector<8x256xf32> -> vector<8x256xf32>
    %c0_69 = arith.constant 0 : index
    %c0_70 = arith.constant 0 : index
    %71 = vector.load %arg9[%c0_69, %c0_70] : memref<8x1xf32, #tpu.memory_space<vmem>>, vector<8x1xf32>
    %72 = vector.broadcast %71 : vector<8x1xf32> to vector<8x256xf32>
    %73 = arith.addf %70, %72 : vector<8x256xf32>
    %cst_71 = arith.constant 0.000000e+00 : f32
    %74 = vector.broadcast %cst_71 : f32 to vector<8x256xf32>
    %75 = arith.maximumf %73, %74 : vector<8x256xf32>
    %c0_72 = arith.constant 0 : index
    %c17_73 = arith.constant 17 : index
    %76 = vector.load %arg16[%c0_72, %c17_73] : memref<16x384xf32, #tpu.memory_space<vmem>>, vector<8x256xf32>
    tpu.vector_store %arg16[%c0_72, %c17_73], %75 {strides = array<i32>} : memref<16x384xf32, #tpu.memory_space<vmem>>, vector<8x256xf32>,
    %c0_74 = arith.constant 0 : index
    %c0_75 = arith.constant 0 : index
    %77 = vector.load %arg16[%c0_74, %c0_75] : memref<16x384xf32, #tpu.memory_space<vmem>>, vector<8x256xf32>
    %c0_76 = arith.constant 0 : index
    %c0_77 = arith.constant 0 : index
    %78 = vector.load %arg2[%c0_76, %c0_77] : memref<2x256xf32, #tpu.memory_space<vmem>>, vector<1x256xf32>
    %79 = vector.broadcast %78 : vector<1x256xf32> to vector<8x256xf32>
    %80 = arith.mulf %77, %79 : vector<8x256xf32>
    %c0_78 = arith.constant 0 : index
    %c1_79 = arith.constant 1 : index
    %81 = vector.load %arg16[%c0_78, %c1_79] : memref<16x384xf32, #tpu.memory_space<vmem>>, vector<8x256xf32>
    %c0_80 = arith.constant 0 : index
    %c2_81 = arith.constant 2 : index
    %82 = vector.load %arg16[%c0_80, %c2_81] : memref<16x384xf32, #tpu.memory_space<vmem>>, vector<8x256xf32>
    %c1_82 = arith.constant 1 : index
    %c0_83 = arith.constant 0 : index
    %83 = vector.load %arg2[%c1_82, %c0_83] : memref<2x256xf32, #tpu.memory_space<vmem>>, vector<1x256xf32>
    %84 = vector.broadcast %83 : vector<1x256xf32> to vector<8x256xf32>
    %85 = arith.mulf %82, %84 : vector<8x256xf32>
    %c0_84 = arith.constant 0 : index
    %c16_85 = arith.constant 16 : index
    %86 = vector.load %arg16[%c0_84, %c16_85] : memref<16x384xf32, #tpu.memory_space<vmem>>, vector<8x256xf32>
    %c0_86 = arith.constant 0 : index
    %c0_87 = arith.constant 0 : index
    %87 = vector.load %arg2[%c0_86, %c0_87] : memref<2x256xf32, #tpu.memory_space<vmem>>, vector<1x256xf32>
    %88 = vector.broadcast %87 : vector<1x256xf32> to vector<8x256xf32>
    %89 = arith.mulf %86, %88 : vector<8x256xf32>
    %c0_88 = arith.constant 0 : index
    %c17_89 = arith.constant 17 : index
    %90 = vector.load %arg16[%c0_88, %c17_89] : memref<16x384xf32, #tpu.memory_space<vmem>>, vector<8x256xf32>
    %c0_90 = arith.constant 0 : index
    %c18_91 = arith.constant 18 : index
    %91 = vector.load %arg16[%c0_90, %c18_91] : memref<16x384xf32, #tpu.memory_space<vmem>>, vector<8x256xf32>
    %c1_92 = arith.constant 1 : index
    %c0_93 = arith.constant 0 : index
    %92 = vector.load %arg2[%c1_92, %c0_93] : memref<2x256xf32, #tpu.memory_space<vmem>>, vector<1x256xf32>
    %93 = vector.broadcast %92 : vector<1x256xf32> to vector<8x256xf32>
    %94 = arith.mulf %91, %93 : vector<8x256xf32>
    %c0_94 = arith.constant 0 : index
    %c32_95 = arith.constant 32 : index
    %95 = vector.load %arg16[%c0_94, %c32_95] : memref<16x384xf32, #tpu.memory_space<vmem>>, vector<8x256xf32>
    %c0_96 = arith.constant 0 : index
    %c0_97 = arith.constant 0 : index
    %96 = vector.load %arg2[%c0_96, %c0_97] : memref<2x256xf32, #tpu.memory_space<vmem>>, vector<1x256xf32>
    %97 = vector.broadcast %96 : vector<1x256xf32> to vector<8x256xf32>
    %98 = arith.mulf %95, %97 : vector<8x256xf32>
    %c0_98 = arith.constant 0 : index
    %c33_99 = arith.constant 33 : index
    %99 = vector.load %arg16[%c0_98, %c33_99] : memref<16x384xf32, #tpu.memory_space<vmem>>, vector<8x256xf32>
    %c0_100 = arith.constant 0 : index
    %c34_101 = arith.constant 34 : index
    %100 = vector.load %arg16[%c0_100, %c34_101] : memref<16x384xf32, #tpu.memory_space<vmem>>, vector<8x256xf32>
    %c1_102 = arith.constant 1 : index
    %c0_103 = arith.constant 0 : index
    %101 = vector.load %arg2[%c1_102, %c0_103] : memref<2x256xf32, #tpu.memory_space<vmem>>, vector<1x256xf32>
    %102 = vector.broadcast %101 : vector<1x256xf32> to vector<8x256xf32>
    %103 = arith.mulf %100, %102 : vector<8x256xf32>
    %104 = tpu.concatenate %80, %81, %85, %89, %90, %94, %98, %99, %103 in 0 : vector<8x256xf32>, vector<8x256xf32>, vector<8x256xf32>, vector<8x256xf32>, vector<8x256xf32>, vector<8x256xf32>, vector<8x256xf32>, vector<8x256xf32>, vector<8x256xf32> -> vector<72x256xf32>
    %c0_104 = arith.constant 0 : index
    %c0_105 = arith.constant 0 : index
    %105 = vector.load %arg10[%c0_104, %c0_105] : memref<16x72xf32, #tpu.memory_space<vmem>>, vector<16x72xf32>
    %cst_106 = arith.constant dense<0.000000e+00> : vector<16x256xf32>
    %106 = tpu.matmul %105, %104, %cst_106 {dimension_numbers = #tpu.dot_dimension_numbers<[1], [0], [0], [1], [0, 0, 1, 1], [], []>} : vector<16x72xf32>, vector<72x256xf32>, vector<16x256xf32> -> vector<16x256xf32>
    %c0_107 = arith.constant 0 : index
    %c0_108 = arith.constant 0 : index
    %107 = vector.load %arg4[%c0_107, %c0_108] : memref<256x64xf32, #tpu.memory_space<vmem>>, vector<256x64xf32>
    %cst_109 = arith.constant dense<0.000000e+00> : vector<16x64xf32>
    %108 = tpu.matmul %106, %107, %cst_109 {dimension_numbers = #tpu.dot_dimension_numbers<[1], [0], [0], [1], [0, 0, 1, 1], [], []>} : vector<16x256xf32>, vector<256x64xf32>, vector<16x64xf32> -> vector<16x64xf32>
    %c0_110 = arith.constant 0 : index
    %c0_111 = arith.constant 0 : index
    %109 = vector.load %arg11[%c0_110, %c0_111] : memref<16x1xf32, #tpu.memory_space<vmem>>, vector<16x1xf32>
    %110 = vector.broadcast %109 : vector<16x1xf32> to vector<16x64xf32>
    %111 = arith.addf %108, %110 : vector<16x64xf32>
    %cst_112 = arith.constant 0.000000e+00 : f32
    %112 = vector.broadcast %cst_112 : f32 to vector<16x64xf32>
    %113 = arith.maximumf %111, %112 : vector<16x64xf32>
    %c0_113 = arith.constant 0 : index
    %c0_114 = arith.constant 0 : index
    %c0_115 = arith.constant 0 : index
    %114 = vector.load %arg14[%c0_113, %c0_114, %c0_115] : memref<1x16x64xf32, #tpu.memory_space<vmem>>, vector<1x16x64xf32>
    %115 = vector.shape_cast %114 : vector<1x16x64xf32> to vector<16x64xf32>
    %116 = vector.shape_cast %113 : vector<16x64xf32> to vector<1x16x64xf32>
    tpu.vector_store %arg14[%c0_113, %c0_114, %c0_115], %116 {strides = array<i32>} : memref<1x16x64xf32, #tpu.memory_space<vmem>>, vector<1x16x64xf32>,
    %cst_116 = arith.constant 0.000000e+00 : f32
    %117 = vector.broadcast %cst_116 : f32 to vector<16x82xf32>
    %c0_117 = arith.constant 0 : index
    %c0_118 = arith.constant 0 : index
    %118 = vector.load %arg16[%c0_117, %c0_118] : memref<16x384xf32, #tpu.memory_space<vmem>>, vector<16x82xf32>
    tpu.vector_store %arg16[%c0_117, %c0_118], %117 {strides = array<i32>} : memref<16x384xf32, #tpu.memory_space<vmem>>, vector<16x82xf32>,
    %c0_119 = arith.constant 0 : index
    %c9 = arith.constant 9 : index
    %119 = vector.load %arg16[%c0_119, %c9] : memref<16x384xf32, #tpu.memory_space<vmem>>, vector<16x64xf32>
    tpu.vector_store %arg16[%c0_119, %c9], %113 {strides = array<i32>} : memref<16x384xf32, #tpu.memory_space<vmem>>, vector<16x64xf32>,
    %c0_120 = arith.constant 0 : index
    %c0_121 = arith.constant 0 : index
    %120 = vector.load %arg16[%c0_120, %c0_121] : memref<16x384xf32, #tpu.memory_space<vmem>>, vector<16x64xf32>
    %c0_122 = arith.constant 0 : index
    %c0_123 = arith.constant 0 : index
    %121 = vector.load %arg3[%c0_122, %c0_123] : memref<2x64xf32, #tpu.memory_space<vmem>>, vector<1x64xf32>
    %122 = vector.broadcast %121 : vector<1x64xf32> to vector<16x64xf32>
    %123 = arith.mulf %120, %122 : vector<16x64xf32>
    %c0_124 = arith.constant 0 : index
    %c1_125 = arith.constant 1 : index
    %124 = vector.load %arg16[%c0_124, %c1_125] : memref<16x384xf32, #tpu.memory_space<vmem>>, vector<16x64xf32>
    %c0_126 = arith.constant 0 : index
    %c2_127 = arith.constant 2 : index
    %125 = vector.load %arg16[%c0_126, %c2_127] : memref<16x384xf32, #tpu.memory_space<vmem>>, vector<16x64xf32>
    %c1_128 = arith.constant 1 : index
    %c0_129 = arith.constant 0 : index
    %126 = vector.load %arg3[%c1_128, %c0_129] : memref<2x64xf32, #tpu.memory_space<vmem>>, vector<1x64xf32>
    %127 = vector.broadcast %126 : vector<1x64xf32> to vector<16x64xf32>
    %128 = arith.mulf %125, %127 : vector<16x64xf32>
    %c0_130 = arith.constant 0 : index
    %c8 = arith.constant 8 : index
    %129 = vector.load %arg16[%c0_130, %c8] : memref<16x384xf32, #tpu.memory_space<vmem>>, vector<16x64xf32>
    %c0_131 = arith.constant 0 : index
    %c0_132 = arith.constant 0 : index
    %130 = vector.load %arg3[%c0_131, %c0_132] : memref<2x64xf32, #tpu.memory_space<vmem>>, vector<1x64xf32>
    %131 = vector.broadcast %130 : vector<1x64xf32> to vector<16x64xf32>
    %132 = arith.mulf %129, %131 : vector<16x64xf32>
    %c0_133 = arith.constant 0 : index
    %c9_134 = arith.constant 9 : index
    %133 = vector.load %arg16[%c0_133, %c9_134] : memref<16x384xf32, #tpu.memory_space<vmem>>, vector<16x64xf32>
    %c0_135 = arith.constant 0 : index
    %c10 = arith.constant 10 : index
    %134 = vector.load %arg16[%c0_135, %c10] : memref<16x384xf32, #tpu.memory_space<vmem>>, vector<16x64xf32>
    %c1_136 = arith.constant 1 : index
    %c0_137 = arith.constant 0 : index
    %135 = vector.load %arg3[%c1_136, %c0_137] : memref<2x64xf32, #tpu.memory_space<vmem>>, vector<1x64xf32>
    %136 = vector.broadcast %135 : vector<1x64xf32> to vector<16x64xf32>
    %137 = arith.mulf %134, %136 : vector<16x64xf32>
    %c0_138 = arith.constant 0 : index
    %c16_139 = arith.constant 16 : index
    %138 = vector.load %arg16[%c0_138, %c16_139] : memref<16x384xf32, #tpu.memory_space<vmem>>, vector<16x64xf32>
    %c0_140 = arith.constant 0 : index
    %c0_141 = arith.constant 0 : index
    %139 = vector.load %arg3[%c0_140, %c0_141] : memref<2x64xf32, #tpu.memory_space<vmem>>, vector<1x64xf32>
    %140 = vector.broadcast %139 : vector<1x64xf32> to vector<16x64xf32>
    %141 = arith.mulf %138, %140 : vector<16x64xf32>
    %c0_142 = arith.constant 0 : index
    %c17_143 = arith.constant 17 : index
    %142 = vector.load %arg16[%c0_142, %c17_143] : memref<16x384xf32, #tpu.memory_space<vmem>>, vector<16x64xf32>
    %c0_144 = arith.constant 0 : index
    %c18_145 = arith.constant 18 : index
    %143 = vector.load %arg16[%c0_144, %c18_145] : memref<16x384xf32, #tpu.memory_space<vmem>>, vector<16x64xf32>
    %c1_146 = arith.constant 1 : index
    %c0_147 = arith.constant 0 : index
    %144 = vector.load %arg3[%c1_146, %c0_147] : memref<2x64xf32, #tpu.memory_space<vmem>>, vector<1x64xf32>
    %145 = vector.broadcast %144 : vector<1x64xf32> to vector<16x64xf32>
    %146 = arith.mulf %143, %145 : vector<16x64xf32>
    %147 = tpu.concatenate %123, %124, %128, %132, %133, %137, %141, %142, %146 in 0 : vector<16x64xf32>, vector<16x64xf32>, vector<16x64xf32>, vector<16x64xf32>, vector<16x64xf32>, vector<16x64xf32>, vector<16x64xf32>, vector<16x64xf32>, vector<16x64xf32> -> vector<144x64xf32>
    %c0_148 = arith.constant 0 : index
    %c0_149 = arith.constant 0 : index
    %148 = vector.load %arg12[%c0_148, %c0_149] : memref<32x144xf32, #tpu.memory_space<vmem>>, vector<32x144xf32>
    %cst_150 = arith.constant dense<0.000000e+00> : vector<32x64xf32>
    %149 = tpu.matmul %148, %147, %cst_150 {dimension_numbers = #tpu.dot_dimension_numbers<[1], [0], [0], [1], [0, 0, 1, 1], [], []>} : vector<32x144xf32>, vector<144x64xf32>, vector<32x64xf32> -> vector<32x64xf32>
    %c0_151 = arith.constant 0 : index
    %c0_152 = arith.constant 0 : index
    %150 = vector.load %arg5[%c0_151, %c0_152] : memref<64x16xf32, #tpu.memory_space<vmem>>, vector<64x16xf32>
    %cst_153 = arith.constant dense<0.000000e+00> : vector<32x16xf32>
    %151 = tpu.matmul %149, %150, %cst_153 {dimension_numbers = #tpu.dot_dimension_numbers<[1], [0], [0], [1], [0, 0, 1, 1], [], []>} : vector<32x64xf32>, vector<64x16xf32>, vector<32x16xf32> -> vector<32x16xf32>
    %c0_154 = arith.constant 0 : index
    %c0_155 = arith.constant 0 : index
    %152 = vector.load %arg13[%c0_154, %c0_155] : memref<32x1xf32, #tpu.memory_space<vmem>>, vector<32x1xf32>
    %153 = vector.broadcast %152 : vector<32x1xf32> to vector<32x16xf32>
    %154 = arith.addf %151, %153 : vector<32x16xf32>
    %cst_156 = arith.constant 0.000000e+00 : f32
    %155 = vector.broadcast %cst_156 : f32 to vector<32x16xf32>
    %156 = arith.maximumf %154, %155 : vector<32x16xf32>
    %c0_157 = arith.constant 0 : index
    %c0_158 = arith.constant 0 : index
    %c0_159 = arith.constant 0 : index
    %157 = vector.load %arg15[%c0_157, %c0_158, %c0_159] : memref<1x32x16xf32, #tpu.memory_space<vmem>>, vector<1x32x16xf32>
    %158 = vector.shape_cast %157 : vector<1x32x16xf32> to vector<32x16xf32>
    %159 = vector.shape_cast %156 : vector<32x16xf32> to vector<1x32x16xf32>
    tpu.vector_store %arg15[%c0_157, %c0_158, %c0_159], %159 {strides = array<i32>} : memref<1x32x16xf32, #tpu.memory_space<vmem>>, vector<1x32x16xf32>,
    return
  }
  func.func @transform_0(%arg0: i32) -> (i32, i32, i32) {
    %c0_i32 = arith.constant 0 : i32
    %c0_i32_0 = arith.constant 0 : i32
    %c0_i32_1 = arith.constant 0 : i32
    return %arg0, %c0_i32, %c0_i32_0 : i32, i32, i32
  }
  func.func @transform_1(%arg0: i32) -> (i32, i32) {
    %c0_i32 = arith.constant 0 : i32
    %c0_i32_0 = arith.constant 0 : i32
    %c0_i32_1 = arith.constant 0 : i32
    return %c0_i32, %c0_i32_0 : i32, i32
  }
  func.func @transform_2(%arg0: i32) -> (i32, i32) {
    %c0_i32 = arith.constant 0 : i32
    %c0_i32_0 = arith.constant 0 : i32
    %c0_i32_1 = arith.constant 0 : i32
    return %c0_i32, %c0_i32_0 : i32, i32
  }
  func.func @transform_3(%arg0: i32) -> (i32, i32) {
    %c0_i32 = arith.constant 0 : i32
    %c0_i32_0 = arith.constant 0 : i32
    %c0_i32_1 = arith.constant 0 : i32
    return %c0_i32, %c0_i32_0 : i32, i32
  }
  func.func @transform_4(%arg0: i32) -> (i32, i32) {
    %c0_i32 = arith.constant 0 : i32
    %c0_i32_0 = arith.constant 0 : i32
    %c0_i32_1 = arith.constant 0 : i32
    return %c0_i32, %c0_i32_0 : i32, i32
  }
  func.func @transform_5(%arg0: i32) -> (i32, i32) {
    %c0_i32 = arith.constant 0 : i32
    %c0_i32_0 = arith.constant 0 : i32
    %c0_i32_1 = arith.constant 0 : i32
    return %c0_i32, %c0_i32_0 : i32, i32
  }
  func.func @transform_6(%arg0: i32) -> (i32, i32) {
    %c0_i32 = arith.constant 0 : i32
    %c0_i32_0 = arith.constant 0 : i32
    %c0_i32_1 = arith.constant 0 : i32
    return %c0_i32, %c0_i32_0 : i32, i32
  }
  func.func @transform_7(%arg0: i32) -> (i32, i32) {
    %c0_i32 = arith.constant 0 : i32
    %c0_i32_0 = arith.constant 0 : i32
    %c0_i32_1 = arith.constant 0 : i32
    return %c0_i32, %c0_i32_0 : i32, i32
  }
  func.func @transform_8(%arg0: i32) -> (i32, i32) {
    %c0_i32 = arith.constant 0 : i32
    %c0_i32_0 = arith.constant 0 : i32
    %c0_i32_1 = arith.constant 0 : i32
    return %c0_i32, %c0_i32_0 : i32, i32
  }
  func.func @transform_9(%arg0: i32) -> (i32, i32) {
    %c0_i32 = arith.constant 0 : i32
    %c0_i32_0 = arith.constant 0 : i32
    %c0_i32_1 = arith.constant 0 : i32
    return %c0_i32, %c0_i32_0 : i32, i32
  }
  func.func @transform_10(%arg0: i32) -> (i32, i32) {
    %c0_i32 = arith.constant 0 : i32
    %c0_i32_0 = arith.constant 0 : i32
    %c0_i32_1 = arith.constant 0 : i32
    return %c0_i32, %c0_i32_0 : i32, i32
  }
  func.func @transform_11(%arg0: i32) -> (i32, i32) {
    %c0_i32 = arith.constant 0 : i32
    %c0_i32_0 = arith.constant 0 : i32
    %c0_i32_1 = arith.constant 0 : i32
    return %c0_i32, %c0_i32_0 : i32, i32
  }
  func.func @transform_12(%arg0: i32) -> (i32, i32) {
    %c0_i32 = arith.constant 0 : i32
    %c0_i32_0 = arith.constant 0 : i32
    %c0_i32_1 = arith.constant 0 : i32
    return %c0_i32, %c0_i32_0 : i32, i32
  }
  func.func @transform_13(%arg0: i32) -> (i32, i32, i32) {
    %c0_i32 = arith.constant 0 : i32
    %c0_i32_0 = arith.constant 0 : i32
    %c0_i32_1 = arith.constant 0 : i32
    return %arg0, %c0_i32, %c0_i32_0 : i32, i32, i32
  }
  func.func @transform_14(%arg0: i32) -> (i32, i32, i32) {
    %c0_i32 = arith.constant 0 : i32
    %c0_i32_0 = arith.constant 0 : i32
    %c0_i32_1 = arith.constant 0 : i32
    return %arg0, %c0_i32, %c0_i32_0 : i32, i32, i32
  }
}

</mosaic_0001>

<llo_original>
// kernel: _forward_impl.1
$region0: #{_forward_impl.1}
  #allocation0 [shape = 'u32[]', space=smem, size = 0x4, offset = 0x4, fixed_abs, tag = 'smem constant byte address 0x4 - core index']
  #allocation1 [shape = 'u32[144,128]{1,0:T(1,128)}', space=vmem, size = 0x12000, scoped, tag = 'internal scratch']
  #allocation2 [shape = 'f32[16,384]{1,0:T(8,128)}', space=vmem, size = 0x6000, scoped, tag = 'scratch operand']
  %s0 = inlined_call_operand.vmem [shape: f32[2,8,256], index: 0, kind: input, shape index: {}]
  %s1 = inlined_call_operand.hbm [shape: f32[2,256], index: 1, kind: input, shape index: {}]
  %s2 = inlined_call_operand.hbm [shape: f32[2,64], index: 2, kind: input, shape index: {}]
  %s3 = inlined_call_operand.hbm [shape: f32[256,64], index: 3, kind: input, shape index: {}]
  %s4 = inlined_call_operand.vmem [shape: f32[64,16], index: 4, kind: input, shape index: {}]
  %s5 = inlined_call_operand.hbm [shape: f32[8,72], index: 5, kind: input, shape index: {}]
  %s6 = inlined_call_operand.hbm [shape: f32[8,1], index: 6, kind: input, shape index: {}]
  %s7 = inlined_call_operand.hbm [shape: f32[8,72], index: 7, kind: input, shape index: {}]
  %s8 = inlined_call_operand.hbm [shape: f32[8,1], index: 8, kind: input, shape index: {}]
  %s9 = inlined_call_operand.vmem [shape: f32[16,72], index: 9, kind: input, shape index: {}]
  %s10 = inlined_call_operand.vmem [shape: f32[16,1], index: 10, kind: input, shape index: {}]
  %s11 = inlined_call_operand.vmem [shape: f32[32,144], index: 11, kind: input, shape index: {}]
  %s12 = inlined_call_operand.vmem [shape: f32[32,1], index: 12, kind: input, shape index: {}]
  %s13 = inlined_call_operand.vmem [shape: f32[2,16,64], index: 13, kind: output, shape index: {0}]
  %s14 = inlined_call_operand.vmem [shape: f32[2,32,16], index: 14, kind: output, shape index: {1}]
  %15 = xla_tuple %s13, %s14
  %s16 = sld [smem:[#allocation0]]
  $region121: #{_forward_impl.1} parent=0
    _
  %s18 = ssub.s32 1, %s16
  %s19 = scalar_select 0, %s18, %s16
  $region1: #{_forward_impl.1} parent=0
    #allocation3 [shape = 'u8[2048]{0}', space=vmem, size = 0x800, scoped, tag = 'input window, operand 1, single buffered']
    #allocation4 [shape = 's32[2]{0}', space=sflag, size = 0x8, scoped, tag = 'scoped memory for _forward_impl.1']
    #allocation5 [shape = 'u8[1024]{0}', space=vmem, size = 0x400, scoped, tag = 'input window, operand 2, single buffered']
    #allocation6 [shape = 's32[1]{0}', space=sflag, size = 0x4, scoped, tag = 'scoped memory for _forward_impl.1']
    #allocation7 [shape = 'u8[131072]{0}', space=vmem, size = 0x20000, scoped, tag = 'input window, operand 3, single buffered']
    #allocation8 [shape = 'u8[4096]{0}', space=vmem, size = 0x1000, scoped, tag = 'input window, operand 5, single buffered']
    #allocation9 [shape = 's32[1]{0}', space=sflag, size = 0x4, scoped, tag = 'scoped memory for _forward_impl.1']
    #allocation10 [shape = 'u8[4096]{0}', space=vmem, size = 0x1000, scoped, tag = 'input window, operand 6, single buffered']
    #allocation11 [shape = 'u8[4096]{0}', space=vmem, size = 0x1000, scoped, tag = 'input window, operand 7, single buffered']
    #allocation12 [shape = 's32[1]{0}', space=sflag, size = 0x4, scoped, tag = 'scoped memory for _forward_impl.1']
    #allocation13 [shape = 'u8[4096]{0}', space=vmem, size = 0x1000, scoped, tag = 'input window, operand 8, single buffered']
    %20 = vsyncpa [#allocation4], 0
    %21 = vsyncpa [#allocation6], 0
    %22 = vsyncpa [#allocation9], 0
    %23 = vsyncpa [#allocation12], 0
    loop: start=0, step=1, limit=4
    $region2: #{_forward_impl.1} parent=1 // loop_pre_header
      _
    $region3: #{_forward_impl.1} parent=1 // loop_header
      %s25 = sphi 0, %s29
      %p26 = scmp.ge.s32.totalorder %s25, 4
      %s35 = sphi 0, %s37
      %s38 = sphi 0, %s35
      %s39 = sphi 0, %s38
      %s55 = sphi 0, %s39
      %s59 = sphi 0, %s59
      %s61 = sphi 0, %s59
      %s62 = sphi 0, %s61
      %s76 = sphi 0, %s62
      %s80 = sphi 0, %s80
      %s82 = sphi 0, %s80
      %s83 = sphi 0, %s82
      %s97 = sphi 0, %s83
      %s101 = sphi 0, %s101
      %s103 = sphi 0, %s101
      %s104 = sphi 0, %s103
      %s118 = sphi 0, %s104
      %s122 = sphi 0, %s122
      %s124 = sphi 0, %s122
      %s125 = sphi 0, %s124
      %s139 = sphi 0, %s125
      %s143 = sphi 0, %s143
      %s145 = sphi 0, %s143
      %s146 = sphi 0, %s145
      %s160 = sphi 0, %s146
      %s164 = sphi 0, %s164
      %s166 = sphi 0, %s164
      %s167 = sphi 0, %s166
      %s181 = sphi 0, %s167
      %s185 = sphi 0, %s185
      %s187 = sphi 0, %s185
      %s188 = sphi 0, %s187
      %s202 = sphi 0, %s188
      %s206 = sphi 0, %s206
      %s208 = sphi 0, %s206
      %s209 = sphi 0, %s208
      %s223 = sphi 0, %s209
      %s227 = sphi 0, %s227
      %s229 = sphi 0, %s227
      %s230 = sphi 0, %s229
      %s244 = sphi 0, %s230
      %s248 = sphi 0, %s248
      %s250 = sphi 0, %s248
      %s251 = sphi 0, %s250
      %s265 = sphi 0, %s251
      %s269 = sphi 0, %s269
      %s271 = sphi 0, %s269
      %s272 = sphi 0, %s271
      %s286 = sphi 0, %s272
      %s290 = sphi 0, %s290
      %s292 = sphi 0, %s290
      %s293 = sphi 0, %s292
      %s307 = sphi 0, %s293
      %s313 = sphi 0, %s315
      %s316 = sphi 0, %s313
      %s317 = sphi 0, %s316
      %s333 = sphi 0, %s317
      %s339 = sphi 0, %s341
      %s342 = sphi 0, %s339
      %s343 = sphi 0, %s342
      %s359 = sphi 0, %s343
    $region4: #{_forward_impl.1} parent=1 // loop_header_branch
      %28 = sbr.rel (%p26) target = $region8
    $region5: #{_forward_impl.1} parent=1 // loop_body
      %s30 = ssub.s32 %s25, 1
      %s31 = ssub.s32 %s25, 2
      %s32 = sadd.s32 %s25, 1
      %s33 = ssub.s32 %s25, %s32
      %p34 = scmp.eq.s32.totalorder %s33, 0
      %s36 = sadd.s32 %s35, 1
      %s37 = scalar_select %p34, %s35, %s36
      %p40 = pneg %p34
      %p41 = scmp.eq.s32.totalorder %s25, 1
      %p42 = por %p40, %p41
      %p43 = scmp.ne.s32.totalorder %s35, %s38
      %p44 = scmp.eq.s32.totalorder %s25, 0
      %p45 = por %p43, %p44
      %p46 = scmp.ne.s32.totalorder %s35, %s38
      %p47 = scmp.eq.s32.totalorder %s30, 1
      %p48 = por %p46, %p47
      %p49 = scmp.ne.s32.totalorder %s38, %s39
      %p50 = scmp.eq.s32.totalorder %s30, 0
      %p51 = por %p49, %p50
      %p52 = scmp.ne.s32.totalorder %s38, %s39
      %p53 = scmp.eq.s32.totalorder %s31, 1
      %p54 = por %p52, %p53
      %p56 = scmp.ne.s32.totalorder %s39, %s55
      %p57 = scmp.eq.s32.totalorder %s31, 0
      %p58 = por %p56, %p57
      %s60 = sadd.s32 %s59, 1
      %p63 = scmp.eq.s32.totalorder %s25, 1
      %p64 = scmp.ne.s32.totalorder %s59, %s61
      %p65 = scmp.eq.s32.totalorder %s25, 0
      %p66 = por %p64, %p65
      %p67 = scmp.ne.s32.totalorder %s59, %s61
      %p68 = scmp.eq.s32.totalorder %s30, 1
      %p69 = por %p67, %p68
      %p70 = scmp.ne.s32.totalorder %s61, %s62
      %p71 = scmp.eq.s32.totalorder %s30, 0
      %p72 = por %p70, %p71
      %p73 = scmp.ne.s32.totalorder %s61, %s62
      %p74 = scmp.eq.s32.totalorder %s31, 1
      %p75 = por %p73, %p74
      %p77 = scmp.ne.s32.totalorder %s62, %s76
      %p78 = scmp.eq.s32.totalorder %s31, 0
      %p79 = por %p77, %p78
      %s81 = sadd.s32 %s80, 1
      %p84 = scmp.eq.s32.totalorder %s25, 1
      %p85 = scmp.ne.s32.totalorder %s80, %s82
      %p86 = scmp.eq.s32.totalorder %s25, 0
      %p87 = por %p85, %p86
      %p88 = scmp.ne.s32.totalorder %s80, %s82
      %p89 = scmp.eq.s32.totalorder %s30, 1
      %p90 = por %p88, %p89
      %p91 = scmp.ne.s32.totalorder %s82, %s83
      %p92 = scmp.eq.s32.totalorder %s30, 0
      %p93 = por %p91, %p92
      %p94 = scmp.ne.s32.totalorder %s82, %s83
      %p95 = scmp.eq.s32.totalorder %s31, 1
      %p96 = por %p94, %p95
      %p98 = scmp.ne.s32.totalorder %s83, %s97
      %p99 = scmp.eq.s32.totalorder %s31, 0
      %p100 = por %p98, %p99
      %s102 = sadd.s32 %s101, 1
      %p105 = scmp.eq.s32.totalorder %s25, 1
      %p106 = scmp.ne.s32.totalorder %s101, %s103
      %p107 = scmp.eq.s32.totalorder %s25, 0
      %p108 = por %p106, %p107
      %p109 = scmp.ne.s32.totalorder %s101, %s103
      %p110 = scmp.eq.s32.totalorder %s30, 1
      %p111 = por %p109, %p110
      %p112 = scmp.ne.s32.totalorder %s103, %s104
      %p113 = scmp.eq.s32.totalorder %s30, 0
      %p114 = por %p112, %p113
      %p115 = scmp.ne.s32.totalorder %s103, %s104
      %p116 = scmp.eq.s32.totalorder %s31, 1
      %p117 = por %p115, %p116
      %p119 = scmp.ne.s32.totalorder %s104, %s118
      %p120 = scmp.eq.s32.totalorder %s31, 0
      %p121 = por %p119, %p120
      %s123 = sadd.s32 %s122, 1
      %p126 = scmp.eq.s32.totalorder %s25, 1
      %p127 = scmp.ne.s32.totalorder %s122, %s124
      %p128 = scmp.eq.s32.totalorder %s25, 0
      %p129 = por %p127, %p128
      %p130 = scmp.ne.s32.totalorder %s122, %s124
      %p131 = scmp.eq.s32.totalorder %s30, 1
      %p132 = por %p130, %p131
      %p133 = scmp.ne.s32.totalorder %s124, %s125
      %p134 = scmp.eq.s32.totalorder %s30, 0
      %p135 = por %p133, %p134
      %p136 = scmp.ne.s32.totalorder %s124, %s125
      %p137 = scmp.eq.s32.totalorder %s31, 1
      %p138 = por %p136, %p137
      %p140 = scmp.ne.s32.totalorder %s125, %s139
      %p141 = scmp.eq.s32.totalorder %s31, 0
      %p142 = por %p140, %p141
      %s144 = sadd.s32 %s143, 1
      %p147 = scmp.eq.s32.totalorder %s25, 1
      %p148 = scmp.ne.s32.totalorder %s143, %s145
      %p149 = scmp.eq.s32.totalorder %s25, 0
      %p150 = por %p148, %p149
      %p151 = scmp.ne.s32.totalorder %s143, %s145
      %p152 = scmp.eq.s32.totalorder %s30, 1
      %p153 = por %p151, %p152
      %p154 = scmp.ne.s32.totalorder %s145, %s146
      %p155 = scmp.eq.s32.totalorder %s30, 0
      %p156 = por %p154, %p155
      %p157 = scmp.ne.s32.totalorder %s145, %s146
      %p158 = scmp.eq.s32.totalorder %s31, 1
      %p159 = por %p157, %p158
      %p161 = scmp.ne.s32.totalorder %s146, %s160
      %p162 = scmp.eq.s32.totalorder %s31, 0
      %p163 = por %p161, %p162
      %s165 = sadd.s32 %s164, 1
      %p168 = scmp.eq.s32.totalorder %s25, 1
      %p169 = scmp.ne.s32.totalorder %s164, %s166
      %p170 = scmp.eq.s32.totalorder %s25, 0
      %p171 = por %p169, %p170
      %p172 = scmp.ne.s32.totalorder %s164, %s166
      %p173 = scmp.eq.s32.totalorder %s30, 1
      %p174 = por %p172, %p173
      %p175 = scmp.ne.s32.totalorder %s166, %s167
      %p176 = scmp.eq.s32.totalorder %s30, 0
      %p177 = por %p175, %p176
      %p178 = scmp.ne.s32.totalorder %s166, %s167
      %p179 = scmp.eq.s32.totalorder %s31, 1
      %p180 = por %p178, %p179
      %p182 = scmp.ne.s32.totalorder %s167, %s181
      %p183 = scmp.eq.s32.totalorder %s31, 0
      %p184 = por %p182, %p183
      %s186 = sadd.s32 %s185, 1
      %p189 = scmp.eq.s32.totalorder %s25, 1
      %p190 = scmp.ne.s32.totalorder %s185, %s187
      %p191 = scmp.eq.s32.totalorder %s25, 0
      %p192 = por %p190, %p191
      %p193 = scmp.ne.s32.totalorder %s185, %s187
      %p194 = scmp.eq.s32.totalorder %s30, 1
      %p195 = por %p193, %p194
      %p196 = scmp.ne.s32.totalorder %s187, %s188
      %p197 = scmp.eq.s32.totalorder %s30, 0
      %p198 = por %p196, %p197
      %p199 = scmp.ne.s32.totalorder %s187, %s188
      %p200 = scmp.eq.s32.totalorder %s31, 1
      %p201 = por %p199, %p200
      %p203 = scmp.ne.s32.totalorder %s188, %s202
      %p204 = scmp.eq.s32.totalorder %s31, 0
      %p205 = por %p203, %p204
      %s207 = sadd.s32 %s206, 1
      %p210 = scmp.eq.s32.totalorder %s25, 1
      %p211 = scmp.ne.s32.totalorder %s206, %s208
      %p212 = scmp.eq.s32.totalorder %s25, 0
      %p213 = por %p211, %p212
      %p214 = scmp.ne.s32.totalorder %s206, %s208
      %p215 = scmp.eq.s32.totalorder %s30, 1
      %p216 = por %p214, %p215
      %p217 = scmp.ne.s32.totalorder %s208, %s209
      %p218 = scmp.eq.s32.totalorder %s30, 0
      %p219 = por %p217, %p218
      %p220 = scmp.ne.s32.totalorder %s208, %s209
      %p221 = scmp.eq.s32.totalorder %s31, 1
      %p222 = por %p220, %p221
      %p224 = scmp.ne.s32.totalorder %s209, %s223
      %p225 = scmp.eq.s32.totalorder %s31, 0
      %p226 = por %p224, %p225
      %s228 = sadd.s32 %s227, 1
      %p231 = scmp.eq.s32.totalorder %s25, 1
      %p232 = scmp.ne.s32.totalorder %s227, %s229
      %p233 = scmp.eq.s32.totalorder %s25, 0
      %p234 = por %p232, %p233
      %p235 = scmp.ne.s32.totalorder %s227, %s229
      %p236 = scmp.eq.s32.totalorder %s30, 1
      %p237 = por %p235, %p236
      %p238 = scmp.ne.s32.totalorder %s229, %s230
      %p239 = scmp.eq.s32.totalorder %s30, 0
      %p240 = por %p238, %p239
      %p241 = scmp.ne.s32.totalorder %s229, %s230
      %p242 = scmp.eq.s32.totalorder %s31, 1
      %p243 = por %p241, %p242
      %p245 = scmp.ne.s32.totalorder %s230, %s244
      %p246 = scmp.eq.s32.totalorder %s31, 0
      %p247 = por %p245, %p246
      %s249 = sadd.s32 %s248, 1
      %p252 = scmp.eq.s32.totalorder %s25, 1
      %p253 = scmp.ne.s32.totalorder %s248, %s250
      %p254 = scmp.eq.s32.totalorder %s25, 0
      %p255 = por %p253, %p254
      %p256 = scmp.ne.s32.totalorder %s248, %s250
      %p257 = scmp.eq.s32.totalorder %s30, 1
      %p258 = por %p256, %p257
      %p259 = scmp.ne.s32.totalorder %s250, %s251
      %p260 = scmp.eq.s32.totalorder %s30, 0
      %p261 = por %p259, %p260
      %p262 = scmp.ne.s32.totalorder %s250, %s251
      %p263 = scmp.eq.s32.totalorder %s31, 1
      %p264 = por %p262, %p263
      %p266 = scmp.ne.s32.totalorder %s251, %s265
      %p267 = scmp.eq.s32.totalorder %s31, 0
      %p268 = por %p266, %p267
      %s270 = sadd.s32 %s269, 1
      %p273 = scmp.eq.s32.totalorder %s25, 1
      %p274 = scmp.ne.s32.totalorder %s269, %s271
      %p275 = scmp.eq.s32.totalorder %s25, 0
      %p276 = por %p274, %p275
      %p277 = scmp.ne.s32.totalorder %s269, %s271
      %p278 = scmp.eq.s32.totalorder %s30, 1
      %p279 = por %p277, %p278
      %p280 = scmp.ne.s32.totalorder %s271, %s272
      %p281 = scmp.eq.s32.totalorder %s30, 0
      %p282 = por %p280, %p281
      %p283 = scmp.ne.s32.totalorder %s271, %s272
      %p284 = scmp.eq.s32.totalorder %s31, 1
      %p285 = por %p283, %p284
      %p287 = scmp.ne.s32.totalorder %s272, %s286
      %p288 = scmp.eq.s32.totalorder %s31, 0
      %p289 = por %p287, %p288
      %s291 = sadd.s32 %s290, 1
      %p294 = scmp.eq.s32.totalorder %s25, 1
      %p295 = scmp.ne.s32.totalorder %s290, %s292
      %p296 = scmp.eq.s32.totalorder %s25, 0
      %p297 = por %p295, %p296
      %p298 = scmp.ne.s32.totalorder %s290, %s292
      %p299 = scmp.eq.s32.totalorder %s30, 1
      %p300 = por %p298, %p299
      %p301 = scmp.ne.s32.totalorder %s292, %s293
      %p302 = scmp.eq.s32.totalorder %s30, 0
      %p303 = por %p301, %p302
      %p304 = scmp.ne.s32.totalorder %s292, %s293
      %p305 = scmp.eq.s32.totalorder %s31, 1
      %p306 = por %p304, %p305
      %p308 = scmp.ne.s32.totalorder %s293, %s307
      %p309 = scmp.eq.s32.totalorder %s31, 0
      %p310 = por %p308, %p309
      %s311 = ssub.s32 %s25, %s32
      %p312 = scmp.eq.s32.totalorder %s311, 0
      %s314 = sadd.s32 %s313, 1
      %s315 = scalar_select %p312, %s313, %s314
      %p318 = pneg %p312
      %p319 = scmp.eq.s32.totalorder %s25, 1
      %p320 = por %p318, %p319
      %p321 = scmp.ne.s32.totalorder %s313, %s316
      %p322 = scmp.eq.s32.totalorder %s25, 0
      %p323 = por %p321, %p322
      %p324 = scmp.ne.s32.totalorder %s313, %s316
      %p325 = scmp.eq.s32.totalorder %s30, 1
      %p326 = por %p324, %p325
      %p327 = scmp.ne.s32.totalorder %s316, %s317
      %p328 = scmp.eq.s32.totalorder %s30, 0
      %p329 = por %p327, %p328
      %p330 = scmp.ne.s32.totalorder %s316, %s317
      %p331 = scmp.eq.s32.totalorder %s31, 1
      %p332 = por %p330, %p331
      %p334 = scmp.ne.s32.totalorder %s317, %s333
      %p335 = scmp.eq.s32.totalorder %s31, 0
      %p336 = por %p334, %p335
      %s337 = ssub.s32 %s25, %s32
      %p338 = scmp.eq.s32.totalorder %s337, 0
      %s340 = sadd.s32 %s339, 1
      %s341 = scalar_select %p338, %s339, %s340
      %p344 = pneg %p338
      %p345 = scmp.eq.s32.totalorder %s25, 1
      %p346 = por %p344, %p345
      %p347 = scmp.ne.s32.totalorder %s339, %s342
      %p348 = scmp.eq.s32.totalorder %s25, 0
      %p349 = por %p347, %p348
      %p350 = scmp.ne.s32.totalorder %s339, %s342
      %p351 = scmp.eq.s32.totalorder %s30, 1
      %p352 = por %p350, %p351
      %p353 = scmp.ne.s32.totalorder %s342, %s343
      %p354 = scmp.eq.s32.totalorder %s30, 0
      %p355 = por %p353, %p354
      %p356 = scmp.ne.s32.totalorder %s342, %s343
      %p357 = scmp.eq.s32.totalorder %s31, 1
      %p358 = por %p356, %p357
      %p360 = scmp.ne.s32.totalorder %s343, %s359
      %p361 = scmp.eq.s32.totalorder %s31, 0
      %p362 = por %p360, %p361
      %p363 = scmp.le.s32.totalorder 1, %s25
      %p364 = scmp.lt.s32.totalorder %s25, 3
      %p365 = pnand %p363, %p364
      %p366 = pneg %p365
      // Predicated region
      $region9: #{_forward_impl.1} parent=5 // pred_check
        _
      $region10: #{_forward_impl.1} parent=5 // pred_check_branch
        %368 = sbr.rel (%p365) target = $region12
      $region11: #{_forward_impl.1} parent=5 // pred_region
        %s369 = ssub.s32 %s25, 1
        // Predicated region
        $region13: #{_forward_impl.1} parent=11 // pred_check
          %p370 = pneg %p72
        $region14: #{_forward_impl.1} parent=11 // pred_check_branch
          %372 = sbr.rel (%p370) target = $region16
        $region15: #{_forward_impl.1} parent=11 // pred_region
          %s374 = ssub.s32 64, 64
          %375 = vsyncadd [#allocation4], %s374
          %s377 = sshll.u32 [#allocation3], 4
          %s378 = int_to_ptr.vmem [resolvable:$true] %s377
          %380 = dma.hbm_to_vmem [thread:$0]  %s1, 64, %s378, [#allocation4]
        $region16: #{_forward_impl.1} parent=11 // pred_fallthru
          _
        // Predicated region
        $region17: #{_forward_impl.1} parent=11 // pred_check
          %p381 = pneg %p93
        $region18: #{_forward_impl.1} parent=11 // pred_check_branch
          %383 = sbr.rel (%p381) target = $region20
        $region19: #{_forward_impl.1} parent=11 // pred_region
          %s385 = ssub.s32 32, 32
          %386 = vsyncadd [#allocation6], %s385
          %s388 = sshll.u32 [#allocation5], 4
          %s389 = int_to_ptr.vmem [resolvable:$true] %s388
          %391 = dma.hbm_to_vmem [thread:$0]  %s2, 32, %s389, [#allocation6]
        $region20: #{_forward_impl.1} parent=11 // pred_fallthru
          _
        // Predicated region
        $region21: #{_forward_impl.1} parent=11 // pred_check
          %p392 = pneg %p114
        $region22: #{_forward_impl.1} parent=11 // pred_check_branch
          %394 = sbr.rel (%p392) target = $region24
        $region23: #{_forward_impl.1} parent=11 // pred_region
          %s396 = ssub.s32 4096, 4096
          %397 = vsyncadd [#allocation6], %s396
          %s398 = sshll.u32 [#allocation7], 4
          %s399 = int_to_ptr.vmem [resolvable:$true] %s398
          %404 = dma.hbm_to_vmem [thread:$0]  %s3, 4096, %s399, [#allocation6], 128, 128, 8
        $region24: #{_forward_impl.1} parent=11 // pred_fallthru
          _
        // Predicated region
        $region25: #{_forward_impl.1} parent=11 // pred_check
          %p405 = pneg %p135
        $region26: #{_forward_impl.1} parent=11 // pred_check_branch
          %407 = sbr.rel (%p405) target = $region28
        $region27: #{_forward_impl.1} parent=11 // pred_region
          _
        $region28: #{_forward_impl.1} parent=11 // pred_fallthru
          _
        // Predicated region
        $region29: #{_forward_impl.1} parent=11 // pred_check
          %p408 = pneg %p156
        $region30: #{_forward_impl.1} parent=11 // pred_check_branch
          %410 = sbr.rel (%p408) target = $region32
        $region31: #{_forward_impl.1} parent=11 // pred_region
          %s412 = ssub.s32 128, 128
          %413 = vsyncadd [#allocation9], %s412
          %s415 = sshll.u32 [#allocation8], 4
          %s416 = int_to_ptr.vmem [resolvable:$true] %s415
          %418 = dma.hbm_to_vmem [thread:$0]  %s5, 128, %s416, [#allocation9]
        $region32: #{_forward_impl.1} parent=11 // pred_fallthru
          _
        // Predicated region
        $region33: #{_forward_impl.1} parent=11 // pred_check
          %p419 = pneg %p177
        $region34: #{_forward_impl.1} parent=11 // pred_check_branch
          %421 = sbr.rel (%p419) target = $region36
        $region35: #{_forward_impl.1} parent=11 // pred_region
          %s423 = ssub.s32 128, 128
          %424 = vsyncadd [#allocation9], %s423
          %s426 = sshll.u32 [#allocation10], 4
          %s427 = int_to_ptr.vmem [resolvable:$true] %s426
          %429 = dma.hbm_to_vmem [thread:$0]  %s6, 128, %s427, [#allocation9]
        $region36: #{_forward_impl.1} parent=11 // pred_fallthru
          _
        // Predicated region
        $region37: #{_forward_impl.1} parent=11 // pred_check
          %p430 = pneg %p198
        $region38: #{_forward_impl.1} parent=11 // pred_check_branch
          %432 = sbr.rel (%p430) target = $region40
        $region39: #{_forward_impl.1} parent=11 // pred_region
          %s434 = ssub.s32 128, 128
          %435 = vsyncadd [#allocation12], %s434
          %s437 = sshll.u32 [#allocation11], 4
          %s438 = int_to_ptr.vmem [resolvable:$true] %s437
          %440 = dma.hbm_to_vmem [thread:$0]  %s7, 128, %s438, [#allocation12]
        $region40: #{_forward_impl.1} parent=11 // pred_fallthru
          _
        // Predicated region
        $region41: #{_forward_impl.1} parent=11 // pred_check
          %p441 = pneg %p219
        $region42: #{_forward_impl.1} parent=11 // pred_check_branch
          %443 = sbr.rel (%p441) target = $region44
        $region43: #{_forward_impl.1} parent=11 // pred_region
          %s445 = ssub.s32 128, 128
          %446 = vsyncadd [#allocation12], %s445
          %s448 = sshll.u32 [#allocation13], 4
          %s449 = int_to_ptr.vmem [resolvable:$true] %s448
          %451 = dma.hbm_to_vmem [thread:$0]  %s8, 128, %s449, [#allocation12]
        $region44: #{_forward_impl.1} parent=11 // pred_fallthru
          _
        // Predicated region
        $region45: #{_forward_impl.1} parent=11 // pred_check
          %p452 = pneg %p240
        $region46: #{_forward_impl.1} parent=11 // pred_check_branch
          %454 = sbr.rel (%p452) target = $region48
        $region47: #{_forward_impl.1} parent=11 // pred_region
          _
        $region48: #{_forward_impl.1} parent=11 // pred_fallthru
          _
        // Predicated region
        $region49: #{_forward_impl.1} parent=11 // pred_check
          %p455 = pneg %p261
        $region50: #{_forward_impl.1} parent=11 // pred_check_branch
          %457 = sbr.rel (%p455) target = $region52
        $region51: #{_forward_impl.1} parent=11 // pred_region
          _
        $region52: #{_forward_impl.1} parent=11 // pred_fallthru
          _
        // Predicated region
        $region53: #{_forward_impl.1} parent=11 // pred_check
          %p458 = pneg %p282
        $region54: #{_forward_impl.1} parent=11 // pred_check_branch
          %460 = sbr.rel (%p458) target = $region56
        $region55: #{_forward_impl.1} parent=11 // pred_region
          _
        $region56: #{_forward_impl.1} parent=11 // pred_fallthru
          _
        // Predicated region
        $region57: #{_forward_impl.1} parent=11 // pred_check
          %p461 = pneg %p303
        $region58: #{_forward_impl.1} parent=11 // pred_check_branch
          %463 = sbr.rel (%p461) target = $region60
        $region59: #{_forward_impl.1} parent=11 // pred_region
          _
        $region60: #{_forward_impl.1} parent=11 // pred_fallthru
          _
      $region12: #{_forward_impl.1} parent=5 // pred_fallthru
        _
      %p464 = scmp.lt.s32.totalorder %s25, 2
      // Predicated region
      $region61: #{_forward_impl.1} parent=5 // pred_check
        %p465 = pneg %p464
      $region62: #{_forward_impl.1} parent=5 // pred_check_branch
        %467 = sbr.rel (%p465) target = $region64
      $region63: #{_forward_impl.1} parent=5 // pred_region
        // Predicated region
        $region65: #{_forward_impl.1} parent=63 // pred_check
          %p468 = pneg %p45
        $region66: #{_forward_impl.1} parent=63 // pred_check_branch
          %470 = sbr.rel (%p468) target = $region68
        $region67: #{_forward_impl.1} parent=63 // pred_region
          %p471 = scmp.lt.s32.totalorder %s25, 1
          %s472 = scalar_select %p471, %s25, 1
          %s473 = smul.addr %s472, 2
          %s474 = smul.addr %s473, 8
          %s475 = scalar_lea.vmem %s0, %s474
        $region68: #{_forward_impl.1} parent=63 // pred_fallthru
          _
      $region64: #{_forward_impl.1} parent=5 // pred_fallthru
        _
      %p476 = scmp.le.s32.totalorder 1, %s25
      %p477 = scmp.lt.s32.totalorder %s25, 3
      %p478 = pnand %p476, %p477
      %p479 = pneg %p478
      // Predicated region
      $region69: #{_forward_impl.1} parent=5 // pred_check
        _
      $region70: #{_forward_impl.1} parent=5 // pred_check_branch
        %481 = sbr.rel (%p478) target = $region72
      $region71: #{_forward_impl.1} parent=5 // pred_region
        %s482 = ssub.s32 %s25, 1
        // Predicated region
        $region73: #{_forward_impl.1} parent=71 // pred_check
          %p483 = pneg %p72
        $region74: #{_forward_impl.1} parent=71 // pred_check_branch
          %485 = sbr.rel (%p483) target = $region76
        $region75: #{_forward_impl.1} parent=71 // pred_region
          %486 = dma.done [#allocation4], 64
        $region76: #{_forward_impl.1} parent=71 // pred_fallthru
          _
        // Predicated region
        $region77: #{_forward_impl.1} parent=71 // pred_check
          %p487 = pneg %p93
        $region78: #{_forward_impl.1} parent=71 // pred_check_branch
          %489 = sbr.rel (%p487) target = $region80
        $region79: #{_forward_impl.1} parent=71 // pred_region
          %490 = dma.done [#allocation6], 32
        $region80: #{_forward_impl.1} parent=71 // pred_fallthru
          _
        // Predicated region
        $region81: #{_forward_impl.1} parent=71 // pred_check
          %p491 = pneg %p114
        $region82: #{_forward_impl.1} parent=71 // pred_check_branch
          %493 = sbr.rel (%p491) target = $region84
        $region83: #{_forward_impl.1} parent=71 // pred_region
          %494 = dma.done [#allocation6], 4096
        $region84: #{_forward_impl.1} parent=71 // pred_fallthru
          _
        // Predicated region
        $region85: #{_forward_impl.1} parent=71 // pred_check
          %p495 = pneg %p156
        $region86: #{_forward_impl.1} parent=71 // pred_check_branch
          %497 = sbr.rel (%p495) target = $region88
        $region87: #{_forward_impl.1} parent=71 // pred_region
          %498 = dma.done [#allocation9], 128
        $region88: #{_forward_impl.1} parent=71 // pred_fallthru
          _
        // Predicated region
        $region89: #{_forward_impl.1} parent=71 // pred_check
          %p499 = pneg %p177
        $region90: #{_forward_impl.1} parent=71 // pred_check_branch
          %501 = sbr.rel (%p499) target = $region92
        $region91: #{_forward_impl.1} parent=71 // pred_region
          %502 = dma.done [#allocation9], 128
        $region92: #{_forward_impl.1} parent=71 // pred_fallthru
          _
        // Predicated region
        $region93: #{_forward_impl.1} parent=71 // pred_check
          %p503 = pneg %p198
        $region94: #{_forward_impl.1} parent=71 // pred_check_branch
          %505 = sbr.rel (%p503) target = $region96
        $region95: #{_forward_impl.1} parent=71 // pred_region
          %506 = dma.done [#allocation12], 128
        $region96: #{_forward_impl.1} parent=71 // pred_fallthru
          _
        // Predicated region
        $region97: #{_forward_impl.1} parent=71 // pred_check
          %p507 = pneg %p219
        $region98: #{_forward_impl.1} parent=71 // pred_check_branch
          %509 = sbr.rel (%p507) target = $region100
        $region99: #{_forward_impl.1} parent=71 // pred_region
          %510 = dma.done [#allocation12], 128
        $region100: #{_forward_impl.1} parent=71 // pred_fallthru
          _
        %p511 = scmp.lt.s32.totalorder %s30, 1
        %s512 = scalar_select %p511, %s30, 1
        %s513 = smul.addr %s512, 2
        %s514 = smul.addr %s513, 8
        %s515 = scalar_lea.vmem %s0, %s514
        %p516 = pneg %p51
        %p517 = pneg %p48
        %p518 = pneg %p72
        %p519 = pneg %p69
        %p520 = pneg %p93
        %p521 = pneg %p90
        %p522 = pneg %p114
        %p523 = pneg %p111
        %p524 = pneg %p135
        %p525 = pneg %p132
        %p526 = pneg %p156
        %p527 = pneg %p153
        %p528 = pneg %p177
        %p529 = pneg %p174
        %p530 = pneg %p198
        %p531 = pneg %p195
        %p532 = pneg %p219
        %p533 = pneg %p216
        %p534 = pneg %p240
        %p535 = pneg %p237
        %p536 = pneg %p261
        %p537 = pneg %p258
        %p538 = pneg %p282
        %p539 = pneg %p279
        %p540 = pneg %p303
        %p541 = pneg %p300
        %p542 = pneg %p329
        %p543 = pneg %p326
        %p544 = scmp.lt.s32.totalorder %s30, 1
        %s545 = scalar_select %p544, %s30, 1
        %s546 = smul.addr %s545, 2
        %s547 = smul.addr %s546, 8
        %s548 = scalar_lea.vmem %s13, %s547
        %p549 = pneg %p355
        %p550 = pneg %p352
        %p551 = scmp.lt.s32.totalorder %s30, 1
        %s552 = scalar_select %p551, %s30, 1
        %s553 = smul.addr %s552, 4
        %s554 = smul.addr %s553, 8
        %s555 = scalar_lea.vmem %s14, %s554
        %p556 = scmp.lt.s32.totalorder %s30, 1
        %s557 = scalar_select %p556, %s30, 1
        %s558 = smul.addr %s557, 2
        %s559 = smul.addr %s558, 8
        %s560 = scalar_lea.vmem %s0, %s559
        %p561 = scmp.lt.s32.totalorder %s30, 1
        %s562 = scalar_select %p561, %s30, 1
        %s563 = smul.addr %s562, 2
        %s564 = smul.addr %s563, 8
        %s565 = scalar_lea.vmem %s13, %s564
        %p566 = scmp.lt.s32.totalorder %s30, 1
        %s567 = scalar_select %p566, %s30, 1
        %s568 = smul.addr %s567, 4
        %s569 = smul.addr %s568, 8
        %s570 = scalar_lea.vmem %s14, %s569
        %v571 = vld [vmem:[%s560] sm:$0xff]
        %v572 = vld [vmem:[%s560 + $0x8] sm:$0xff]
        %573 = vst [vmem:[#allocation2] sm:$0xff] 0.0
        %574 = vst [vmem:[#allocation2 + $0x8] sm:$0xff] 0.0
        %vm575 = vcmask 277504
        %576 = vst.msk [vmem:[#allocation2 + $0x10] sm:$0xff] %vm575, 0.0
        %579 = vrot.lane.b32.xlu0 %v571, 17
        %v580 = vpop.permute.xlu0 %579
        %581 = vrot.lane.b32.xlu0 %v572, 17
        %v582 = vpop.permute.xlu0 %581
        %vm583 = vcmask 138240
        %v584 = vsel %vm583, %v580, %v582
        %vm588 = vcmask 1047688
        %589 = vst.msk [vmem:[#allocation2] sm:$0xff] %vm588, %v580
        %590 = vst [vmem:[#allocation2 + $0x8] sm:$0xff] %v584
        %591 = vst.msk [vmem:[#allocation2 + $0x10] sm:$0xff] %vm583, %v582
        %v592 = vld [vmem:[#allocation2] sm:$0xff]
        %v593 = vld [vmem:[#allocation2 + $0x8] sm:$0xff]
        %v594 = vld [vmem:[#allocation3] ss:$2 sm:$0x3]
        %v596 = vlaneseq
        %v597 = vshrl.u32 %v596, 7
        %v598 = vsub.s32 0, %v597
        %v599 = vrot.slane %v594, %v598
        %v600 = vlaneseq
        %v601 = vshrl.u32 %v600, 7
        %v602 = vsub.s32 1, %v601
        %v603 = vrot.slane %v594, %v602
        %v606 = vmul.f32 %v592, %v599
        %v607 = vmul.f32 %v593, %v603
        %v608 = vld [vmem:[#allocation2 + $0x10] sm:$0xff]
        %s609 = scalar_lea.vmem [#allocation3], 1
        %v610 = vld [vmem:[%s609] ss:$2 sm:$0x3]
        %v612 = vlaneseq
        %v613 = vshrl.u32 %v612, 7
        %v614 = vsub.s32 0, %v613
        %v615 = vrot.slane %v610, %v614
        %v616 = vlaneseq
        %v617 = vshrl.u32 %v616, 7
        %v618 = vsub.s32 1, %v617
        %v619 = vrot.slane %v610, %v618
        %620 = vrot.lane.b32.xlu0 %v615, 2
        %v621 = vpop.permute.xlu0 %620
        %622 = vrot.lane.b32.xlu0 %v619, 2
        %v623 = vpop.permute.xlu0 %622
        %vm624 = vcmask 15360
        %v625 = vsel %vm624, %v621, %v623
        %v629 = vmul.f32 %v592, %v621
        %v630 = vmul.f32 %v593, %v625
        %v631 = vmul.f32 %v608, %v623
        %632 = vrot.lane.b32.xlu0 %v599, 16
        %v633 = vpop.permute.xlu0 %632
        %634 = vrot.lane.b32.xlu0 %v603, 16
        %v635 = vpop.permute.xlu0 %634
        %vm636 = vcmask 130048
        %v637 = vsel %vm636, %v633, %v635
        %v641 = vmul.f32 %v592, %v633
        %v642 = vmul.f32 %v593, %v637
        %v643 = vmul.f32 %v608, %v635
        %644 = vrot.lane.b32.xlu0 %v615, 18
        %v645 = vpop.permute.xlu0 %644
        %646 = vrot.lane.b32.xlu0 %v619, 18
        %v647 = vpop.permute.xlu0 %646
        %vm648 = vcmask 146432
        %v649 = vsel %vm648, %v645, %v647
        %v653 = vmul.f32 %v592, %v645
        %v654 = vmul.f32 %v593, %v649
        %v655 = vmul.f32 %v608, %v647
        %656 = vrot.lane.b32.xlu0 %v599, 32
        %v657 = vpop.permute.xlu0 %656
        %658 = vrot.lane.b32.xlu0 %v603, 32
        %v659 = vpop.permute.xlu0 %658
        %vm660 = vcmask 261120
        %v661 = vsel %vm660, %v657, %v659
        %v665 = vmul.f32 %v592, %v657
        %v666 = vmul.f32 %v593, %v661
        %v667 = vmul.f32 %v608, %v659
        %668 = vrot.lane.b32.xlu0 %v615, 34
        %v669 = vpop.permute.xlu0 %668
        %670 = vrot.lane.b32.xlu0 %v619, 34
        %v671 = vpop.permute.xlu0 %670
        %v672 = vsel %vm575, %v669, %v671
        %v676 = vmul.f32 %v592, %v669
        %v677 = vmul.f32 %v593, %v672
        %v678 = vmul.f32 %v608, %v671
        %682 = vrot.lane.b32.xlu0 %v592, 127
        %v683 = vpop.permute.xlu0 %682
        %684 = vrot.lane.b32.xlu0 %v593, 127
        %v685 = vpop.permute.xlu0 %684
        %686 = vrot.lane.b32.xlu0 %v608, 127
        %v687 = vpop.permute.xlu0 %686
        %vm688 = vcmask 1039360
        %v689 = vsel %vm688, %v683, %v685
        %v690 = vsel %vm688, %v685, %v687
        %696 = vrot.lane.b32.xlu0 %v629, 126
        %v697 = vpop.permute.xlu0 %696
        %698 = vrot.lane.b32.xlu0 %v630, 126
        %v699 = vpop.permute.xlu0 %698
        %700 = vrot.lane.b32.xlu0 %v631, 126
        %v701 = vpop.permute.xlu0 %700
        %vm702 = vcmask 1031168
        %v703 = vsel %vm702, %v697, %v699
        %v704 = vsel %vm702, %v699, %v701
        %710 = vrot.lane.b32.xlu0 %v641, 112
        %v711 = vpop.permute.xlu0 %710
        %712 = vrot.lane.b32.xlu0 %v642, 112
        %v713 = vpop.permute.xlu0 %712
        %714 = vrot.lane.b32.xlu0 %v643, 112
        %v715 = vpop.permute.xlu0 %714
        %vm716 = vcmask 916480
        %v717 = vsel %vm716, %v711, %v713
        %v718 = vsel %vm716, %v713, %v715
        %721 = vrot.lane.b32.xlu0 %v592, 111
        %v722 = vpop.permute.xlu0 %721
        %723 = vrot.lane.b32.xlu0 %v593, 111
        %v724 = vpop.permute.xlu0 %723
        %725 = vrot.lane.b32.xlu0 %v608, 111
        %v726 = vpop.permute.xlu0 %725
        %vm727 = vcmask 908288
        %v728 = vsel %vm727, %v722, %v724
        %v729 = vsel %vm727, %v724, %v726
        %735 = vrot.lane.b32.xlu0 %v653, 110
        %v736 = vpop.permute.xlu0 %735
        %737 = vrot.lane.b32.xlu0 %v654, 110
        %v738 = vpop.permute.xlu0 %737
        %739 = vrot.lane.b32.xlu0 %v655, 110
        %v740 = vpop.permute.xlu0 %739
        %vm741 = vcmask 900096
        %v742 = vsel %vm741, %v736, %v738
        %v743 = vsel %vm741, %v738, %v740
        %749 = vrot.lane.b32.xlu0 %v665, 96
        %v750 = vpop.permute.xlu0 %749
        %751 = vrot.lane.b32.xlu0 %v666, 96
        %v752 = vpop.permute.xlu0 %751
        %753 = vrot.lane.b32.xlu0 %v667, 96
        %v754 = vpop.permute.xlu0 %753
        %vm755 = vcmask 785408
        %v756 = vsel %vm755, %v750, %v752
        %v757 = vsel %vm755, %v752, %v754
        %760 = vrot.lane.b32.xlu0 %v592, 95
        %v761 = vpop.permute.xlu0 %760
        %762 = vrot.lane.b32.xlu0 %v593, 95
        %v763 = vpop.permute.xlu0 %762
        %764 = vrot.lane.b32.xlu0 %v608, 95
        %v765 = vpop.permute.xlu0 %764
        %vm766 = vcmask 777216
        %v767 = vsel %vm766, %v761, %v763
        %v768 = vsel %vm766, %v763, %v765
        %774 = vrot.lane.b32.xlu0 %v676, 94
        %v775 = vpop.permute.xlu0 %774
        %776 = vrot.lane.b32.xlu0 %v677, 94
        %v777 = vpop.permute.xlu0 %776
        %778 = vrot.lane.b32.xlu0 %v678, 94
        %v779 = vpop.permute.xlu0 %778
        %vm780 = vcmask 769024
        %v781 = vsel %vm780, %v775, %v777
        %v782 = vsel %vm780, %v777, %v779
        %v785 = vld [vmem:[#allocation8] sm:$0xff]
        %v786 = vld [vmem:[#allocation10] sm:$0xff]
        %788 = vset.pattern.permute.xlu0 0
        %789 = vperm.xlu0 %788, %v786
        %v790 = vpop.permute.xlu0 %789
        %vm792 = vcmask 588800
        %v794 = vsel %vm792, %v785, 0
        %796 = vmatprep.subr.mxu0 %v607
        %797 = vmatpush1.msra.mxu0 %v606
        %798 = vmatprep.subr.mxu0 %v690
        %799 = vmatpush1.msra.mxu0 %v689
        %800 = vmatprep.subr.mxu0 %v704
        %801 = vmatpush1.msra.mxu0 %v703
        %802 = vmatprep.subr.mxu0 %v718
        %803 = vmatpush1.msra.mxu0 %v717
        %804 = vmatprep.subr.mxu0 %v729
        %805 = vmatpush1.msra.mxu0 %v728
        %806 = vmatprep.subr.mxu0 %v743
        %807 = vmatpush1.msra.mxu0 %v742
        %808 = vmatprep.subr.mxu0 %v757
        %809 = vmatpush1.msra.mxu0 %v756
        %810 = vmatprep.subr.mxu0 %v768
        %811 = vmatpush1.msra.mxu0 %v767
        %812 = vmatprep.subr.mxu0 %v782
        %813 = vmatpush1.msra.mxu0 %v781
        %814 = vmatprep.subr.mxu0 0.0
        %815 = vmatpush1.msra.mxu0 0.0
        %816 = vmatprep.subr.mxu0 0.0
        %817 = vmatpush1.msra.mxu0 0.0
        %818 = vmatprep.subr.mxu0 0.0
        %819 = vmatpush1.msra.mxu0 0.0
        %820 = vmatprep.subr.mxu0 0.0
        %821 = vmatpush1.msra.mxu0 0.0
        %822 = vmatprep.subr.mxu0 0.0
        %823 = vmatpush1.msra.mxu0 0.0
        %824 = vmatprep.subr.mxu0 0.0
        %825 = vmatpush1.msra.mxu0 0.0
        %826 = vmatprep.subr.mxu0 0.0
        %827 = vmatpush1.msra.mxu0 0.0
        %828 = vmatprep.subr.mxu0 0.0
        %829 = vmatpush1.msra.mxu0 0.0
        %830 = vmatprep.subr.mxu0 0.0
        %831 = vmatpush1.msra.mxu0 0.0
        %832 = vmatprep.subr.mxu0 0.0
        %833 = vmatpush1.msra.mxu0 0.0
        %834 = vmatprep.subr.mxu0 0.0
        %835 = vmatpush1.msra.mxu0 0.0
        %836 = vmatprep.subr.mxu0 0.0
        %837 = vmatpush1.msra.mxu0 0.0
        %838 = vmatprep.subr.mxu0 0.0
        %839 = vmatpush1.msra.mxu0 0.0
        %840 = vmatprep.subr.mxu0 0.0
        %841 = vmatpush1.msra.mxu0 0.0
        %842 = vmatprep.subr.mxu0 0.0
        %843 = vmatpush1.msra.mxu0 0.0
        %844 = vmatprep.subr.mxu0 0.0
        %845 = vmatpush1.msra.mxu0 0.0
        %846 = vmatprep.subr.mxu0 0.0
        %847 = vmatpush1.msra.mxu0 0.0
        %848 = vmatprep.subr.mxu0 0.0
        %849 = vmatpush1.msra.mxu0 0.0
        %850 = vmatprep.subr.mxu0 0.0
        %851 = vmatpush1.msra.mxu0 0.0
        %852 = vmatprep.subr.mxu0 0.0
        %853 = vmatpush1.msra.mxu0 0.0
        %854 = vmatprep.subr.mxu0 0.0
        %855 = vmatpush1.msra.mxu0 0.0
        %856 = vmatprep.subr.mxu0 0.0
        %857 = vmatpush1.msra.mxu0 0.0
        %858 = vmatprep.subr.mxu0 0.0
        %859 = vmatpush1.msra.mxu0 0.0
        %860 = vmatprep.mubr.f32.mxu0 0.0
        %861 = vmatmul.mubr.f32.gmra.mrb[0].mxu0 %v794
        %v862 = vpop.f32.mrb[0].mxu0
        %v863 = vadd.f32 %v790, %v862
        %v864 = vpop.f32.mrb[0].mxu0
        %v865 = vadd.f32 %v790, %v864
        %866 = vdwg.mxu0
        %v867 = vmax.f32 %v863, 0.0
        %v868 = vmax.f32 %v865, 0.0
        %871 = vrot.lane.b32.xlu0 %v867, 17
        %v872 = vpop.permute.xlu0 %871
        %873 = vrot.lane.b32.xlu0 %v868, 17
        %v874 = vpop.permute.xlu0 %873
        %v875 = vsel %vm583, %v872, %v874
        %879 = vst.msk [vmem:[#allocation2] sm:$0xff] %vm588, %v872
        %880 = vst [vmem:[#allocation2 + $0x8] sm:$0xff] %v875
        %881 = vst.msk [vmem:[#allocation2 + $0x10] sm:$0xff] %vm583, %v874
        %v882 = vld [vmem:[#allocation2] sm:$0xff]
        %v883 = vld [vmem:[#allocation2 + $0x8] sm:$0xff]
        %v884 = vld [vmem:[#allocation3] ss:$2 sm:$0x3]
        %v886 = vlaneseq
        %v887 = vshrl.u32 %v886, 7
        %v888 = vsub.s32 0, %v887
        %v889 = vrot.slane %v884, %v888
        %v890 = vlaneseq
        %v891 = vshrl.u32 %v890, 7
        %v892 = vsub.s32 1, %v891
        %v893 = vrot.slane %v884, %v892
        %v896 = vmul.f32 %v882, %v889
        %v897 = vmul.f32 %v883, %v893
        %v898 = vld [vmem:[#allocation2 + $0x10] sm:$0xff]
        %v899 = vld [vmem:[%s609] ss:$2 sm:$0x3]
        %v901 = vlaneseq
        %v902 = vshrl.u32 %v901, 7
        %v903 = vsub.s32 0, %v902
        %v904 = vrot.slane %v899, %v903
        %v905 = vlaneseq
        %v906 = vshrl.u32 %v905, 7
        %v907 = vsub.s32 1, %v906
        %v908 = vrot.slane %v899, %v907
        %909 = vrot.lane.b32.xlu0 %v904, 2
        %v910 = vpop.permute.xlu0 %909
        %911 = vrot.lane.b32.xlu0 %v908, 2
        %v912 = vpop.permute.xlu0 %911
        %v913 = vsel %vm624, %v910, %v912
        %v917 = vmul.f32 %v882, %v910
        %v918 = vmul.f32 %v883, %v913
        %v919 = vmul.f32 %v898, %v912
        %920 = vrot.lane.b32.xlu0 %v889, 16
        %v921 = vpop.permute.xlu0 %920
        %922 = vrot.lane.b32.xlu0 %v893, 16
        %v923 = vpop.permute.xlu0 %922
        %v924 = vsel %vm636, %v921, %v923
        %v928 = vmul.f32 %v882, %v921
        %v929 = vmul.f32 %v883, %v924
        %v930 = vmul.f32 %v898, %v923
        %931 = vrot.lane.b32.xlu0 %v904, 18
        %v932 = vpop.permute.xlu0 %931
        %933 = vrot.lane.b32.xlu0 %v908, 18
        %v934 = vpop.permute.xlu0 %933
        %v935 = vsel %vm648, %v932, %v934
        %v939 = vmul.f32 %v882, %v932
        %v940 = vmul.f32 %v883, %v935
        %v941 = vmul.f32 %v898, %v934
        %942 = vrot.lane.b32.xlu0 %v889, 32
        %v943 = vpop.permute.xlu0 %942
        %944 = vrot.lane.b32.xlu0 %v893, 32
        %v945 = vpop.permute.xlu0 %944
        %v946 = vsel %vm660, %v943, %v945
        %v950 = vmul.f32 %v882, %v943
        %v951 = vmul.f32 %v883, %v946
        %v952 = vmul.f32 %v898, %v945
        %953 = vrot.lane.b32.xlu0 %v904, 34
        %v954 = vpop.permute.xlu0 %953
        %955 = vrot.lane.b32.xlu0 %v908, 34
        %v956 = vpop.permute.xlu0 %955
        %v957 = vsel %vm575, %v954, %v956
        %v961 = vmul.f32 %v882, %v954
        %v962 = vmul.f32 %v883, %v957
        %v963 = vmul.f32 %v898, %v956
        %967 = vrot.lane.b32.xlu0 %v882, 127
        %v968 = vpop.permute.xlu0 %967
        %969 = vrot.lane.b32.xlu0 %v883, 127
        %v970 = vpop.permute.xlu0 %969
        %971 = vrot.lane.b32.xlu0 %v898, 127
        %v972 = vpop.permute.xlu0 %971
        %v973 = vsel %vm688, %v968, %v970
        %v974 = vsel %vm688, %v970, %v972
        %980 = vrot.lane.b32.xlu0 %v917, 126
        %v981 = vpop.permute.xlu0 %980
        %982 = vrot.lane.b32.xlu0 %v918, 126
        %v983 = vpop.permute.xlu0 %982
        %984 = vrot.lane.b32.xlu0 %v919, 126
        %v985 = vpop.permute.xlu0 %984
        %v986 = vsel %vm702, %v981, %v983
        %v987 = vsel %vm702, %v983, %v985
        %993 = vrot.lane.b32.xlu0 %v928, 112
        %v994 = vpop.permute.xlu0 %993
        %995 = vrot.lane.b32.xlu0 %v929, 112
        %v996 = vpop.permute.xlu0 %995
        %997 = vrot.lane.b32.xlu0 %v930, 112
        %v998 = vpop.permute.xlu0 %997
        %v999 = vsel %vm716, %v994, %v996
        %v1000 = vsel %vm716, %v996, %v998
        %1003 = vrot.lane.b32.xlu0 %v882, 111
        %v1004 = vpop.permute.xlu0 %1003
        %1005 = vrot.lane.b32.xlu0 %v883, 111
        %v1006 = vpop.permute.xlu0 %1005
        %1007 = vrot.lane.b32.xlu0 %v898, 111
        %v1008 = vpop.permute.xlu0 %1007
        %v1009 = vsel %vm727, %v1004, %v1006
        %v1010 = vsel %vm727, %v1006, %v1008
        %1016 = vrot.lane.b32.xlu0 %v939, 110
        %v1017 = vpop.permute.xlu0 %1016
        %1018 = vrot.lane.b32.xlu0 %v940, 110
        %v1019 = vpop.permute.xlu0 %1018
        %1020 = vrot.lane.b32.xlu0 %v941, 110
        %v1021 = vpop.permute.xlu0 %1020
        %v1022 = vsel %vm741, %v1017, %v1019
        %v1023 = vsel %vm741, %v1019, %v1021
        %1029 = vrot.lane.b32.xlu0 %v950, 96
        %v1030 = vpop.permute.xlu0 %1029
        %1031 = vrot.lane.b32.xlu0 %v951, 96
        %v1032 = vpop.permute.xlu0 %1031
        %1033 = vrot.lane.b32.xlu0 %v952, 96
        %v1034 = vpop.permute.xlu0 %1033
        %v1035 = vsel %vm755, %v1030, %v1032
        %v1036 = vsel %vm755, %v1032, %v1034
        %1039 = vrot.lane.b32.xlu0 %v882, 95
        %v1040 = vpop.permute.xlu0 %1039
        %1041 = vrot.lane.b32.xlu0 %v883, 95
        %v1042 = vpop.permute.xlu0 %1041
        %1043 = vrot.lane.b32.xlu0 %v898, 95
        %v1044 = vpop.permute.xlu0 %1043
        %v1045 = vsel %vm766, %v1040, %v1042
        %v1046 = vsel %vm766, %v1042, %v1044
        %1052 = vrot.lane.b32.xlu0 %v961, 94
        %v1053 = vpop.permute.xlu0 %1052
        %1054 = vrot.lane.b32.xlu0 %v962, 94
        %v1055 = vpop.permute.xlu0 %1054
        %1056 = vrot.lane.b32.xlu0 %v963, 94
        %v1057 = vpop.permute.xlu0 %1056
        %v1058 = vsel %vm780, %v1053, %v1055
        %v1059 = vsel %vm780, %v1055, %v1057
        %v1062 = vld [vmem:[#allocation11] sm:$0xff]
        %v1063 = vld [vmem:[#allocation13] sm:$0xff]
        %1065 = vset.pattern.permute.xlu0 0
        %1066 = vperm.xlu0 %1065, %v1063
        %v1067 = vpop.permute.xlu0 %1066
        %v1070 = vsel %vm792, %v1062, 0
        %1072 = vmatprep.subr.mxu0 %v897
        %1073 = vmatpush1.msra.mxu0 %v896
        %1074 = vmatprep.subr.mxu0 %v974
        %1075 = vmatpush1.msra.mxu0 %v973
        %1076 = vmatprep.subr.mxu0 %v987
        %1077 = vmatpush1.msra.mxu0 %v986
        %1078 = vmatprep.subr.mxu0 %v1000
        %1079 = vmatpush1.msra.mxu0 %v999
        %1080 = vmatprep.subr.mxu0 %v1010
        %1081 = vmatpush1.msra.mxu0 %v1009
        %1082 = vmatprep.subr.mxu0 %v1023
        %1083 = vmatpush1.msra.mxu0 %v1022
        %1084 = vmatprep.subr.mxu0 %v1036
        %1085 = vmatpush1.msra.mxu0 %v1035
        %1086 = vmatprep.subr.mxu0 %v1046
        %1087 = vmatpush1.msra.mxu0 %v1045
        %1088 = vmatprep.subr.mxu0 %v1059
        %1089 = vmatpush1.msra.mxu0 %v1058
        %1090 = vmatprep.subr.mxu0 0.0
        %1091 = vmatpush1.msra.mxu0 0.0
        %1092 = vmatprep.subr.mxu0 0.0
        %1093 = vmatpush1.msra.mxu0 0.0
        %1094 = vmatprep.subr.mxu0 0.0
        %1095 = vmatpush1.msra.mxu0 0.0
        %1096 = vmatprep.subr.mxu0 0.0
        %1097 = vmatpush1.msra.mxu0 0.0
        %1098 = vmatprep.subr.mxu0 0.0
        %1099 = vmatpush1.msra.mxu0 0.0
        %1100 = vmatprep.subr.mxu0 0.0
        %1101 = vmatpush1.msra.mxu0 0.0
        %1102 = vmatprep.subr.mxu0 0.0
        %1103 = vmatpush1.msra.mxu0 0.0
        %1104 = vmatprep.subr.mxu0 0.0
        %1105 = vmatpush1.msra.mxu0 0.0
        %1106 = vmatprep.subr.mxu0 0.0
        %1107 = vmatpush1.msra.mxu0 0.0
        %1108 = vmatprep.subr.mxu0 0.0
        %1109 = vmatpush1.msra.mxu0 0.0
        %1110 = vmatprep.subr.mxu0 0.0
        %1111 = vmatpush1.msra.mxu0 0.0
        %1112 = vmatprep.subr.mxu0 0.0
        %1113 = vmatpush1.msra.mxu0 0.0
        %1114 = vmatprep.subr.mxu0 0.0
        %1115 = vmatpush1.msra.mxu0 0.0
        %1116 = vmatprep.subr.mxu0 0.0
        %1117 = vmatpush1.msra.mxu0 0.0
        %1118 = vmatprep.subr.mxu0 0.0
        %1119 = vmatpush1.msra.mxu0 0.0
        %1120 = vmatprep.subr.mxu0 0.0
        %1121 = vmatpush1.msra.mxu0 0.0
        %1122 = vmatprep.subr.mxu0 0.0
        %1123 = vmatpush1.msra.mxu0 0.0
        %1124 = vmatprep.subr.mxu0 0.0
        %1125 = vmatpush1.msra.mxu0 0.0
        %1126 = vmatprep.subr.mxu0 0.0
        %1127 = vmatpush1.msra.mxu0 0.0
        %1128 = vmatprep.subr.mxu0 0.0
        %1129 = vmatpush1.msra.mxu0 0.0
        %1130 = vmatprep.subr.mxu0 0.0
        %1131 = vmatpush1.msra.mxu0 0.0
        %1132 = vmatprep.subr.mxu0 0.0
        %1133 = vmatpush1.msra.mxu0 0.0
        %1134 = vmatprep.subr.mxu0 0.0
        %1135 = vmatpush1.msra.mxu0 0.0
        %1136 = vmatprep.mubr.f32.mxu0 0.0
        %1137 = vmatmul.mubr.f32.gmra.mrb[0].mxu0 %v1070
        %v1138 = vpop.f32.mrb[0].mxu0
        %v1139 = vadd.f32 %v1067, %v1138
        %v1140 = vpop.f32.mrb[0].mxu0
        %v1141 = vadd.f32 %v1067, %v1140
        %1142 = vdwg.mxu0
        %v1143 = vmax.f32 %v1139, 0.0
        %v1144 = vmax.f32 %v1141, 0.0
        %1147 = vrot.lane.b32.xlu0 %v1143, 17
        %v1148 = vpop.permute.xlu0 %1147
        %1149 = vrot.lane.b32.xlu0 %v1144, 17
        %v1150 = vpop.permute.xlu0 %1149
        %v1151 = vsel %vm583, %v1148, %v1150
        %1155 = vst.msk [vmem:[#allocation2] sm:$0xff] %vm588, %v1148
        %1156 = vst [vmem:[#allocation2 + $0x8] sm:$0xff] %v1151
        %1157 = vst.msk [vmem:[#allocation2 + $0x10] sm:$0xff] %vm583, %v1150
        %v1158 = vld [vmem:[#allocation2] sm:$0xff]
        %v1159 = vld [vmem:[#allocation2 + $0x8] sm:$0xff]
        %v1160 = vld [vmem:[#allocation3] ss:$2 sm:$0x3]
        %v1162 = vlaneseq
        %v1163 = vshrl.u32 %v1162, 7
        %v1164 = vsub.s32 0, %v1163
        %v1165 = vrot.slane %v1160, %v1164
        %v1166 = vlaneseq
        %v1167 = vshrl.u32 %v1166, 7
        %v1168 = vsub.s32 1, %v1167
        %v1169 = vrot.slane %v1160, %v1168
        %v1172 = vmul.f32 %v1158, %v1165
        %v1173 = vmul.f32 %v1159, %v1169
        %v1174 = vld [vmem:[#allocation2 + $0x10] sm:$0xff]
        %v1175 = vld [vmem:[%s609] ss:$2 sm:$0x3]
        %v1177 = vlaneseq
        %v1178 = vshrl.u32 %v1177, 7
        %v1179 = vsub.s32 0, %v1178
        %v1180 = vrot.slane %v1175, %v1179
        %v1181 = vlaneseq
        %v1182 = vshrl.u32 %v1181, 7
        %v1183 = vsub.s32 1, %v1182
        %v1184 = vrot.slane %v1175, %v1183
        %1185 = vrot.lane.b32.xlu0 %v1180, 2
        %v1186 = vpop.permute.xlu0 %1185
        %1187 = vrot.lane.b32.xlu0 %v1184, 2
        %v1188 = vpop.permute.xlu0 %1187
        %v1189 = vsel %vm624, %v1186, %v1188
        %v1193 = vmul.f32 %v1158, %v1186
        %v1194 = vmul.f32 %v1159, %v1189
        %v1195 = vmul.f32 %v1174, %v1188
        %1196 = vrot.lane.b32.xlu0 %v1165, 16
        %v1197 = vpop.permute.xlu0 %1196
        %1198 = vrot.lane.b32.xlu0 %v1169, 16
        %v1199 = vpop.permute.xlu0 %1198
        %v1200 = vsel %vm636, %v1197, %v1199
        %v1204 = vmul.f32 %v1158, %v1197
        %v1205 = vmul.f32 %v1159, %v1200
        %v1206 = vmul.f32 %v1174, %v1199
        %1207 = vrot.lane.b32.xlu0 %v1180, 18
        %v1208 = vpop.permute.xlu0 %1207
        %1209 = vrot.lane.b32.xlu0 %v1184, 18
        %v1210 = vpop.permute.xlu0 %1209
        %v1211 = vsel %vm648, %v1208, %v1210
        %v1215 = vmul.f32 %v1158, %v1208
        %v1216 = vmul.f32 %v1159, %v1211
        %v1217 = vmul.f32 %v1174, %v1210
        %1218 = vrot.lane.b32.xlu0 %v1165, 32
        %v1219 = vpop.permute.xlu0 %1218
        %1220 = vrot.lane.b32.xlu0 %v1169, 32
        %v1221 = vpop.permute.xlu0 %1220
        %v1222 = vsel %vm660, %v1219, %v1221
        %v1226 = vmul.f32 %v1158, %v1219
        %v1227 = vmul.f32 %v1159, %v1222
        %v1228 = vmul.f32 %v1174, %v1221
        %1229 = vrot.lane.b32.xlu0 %v1180, 34
        %v1230 = vpop.permute.xlu0 %1229
        %1231 = vrot.lane.b32.xlu0 %v1184, 34
        %v1232 = vpop.permute.xlu0 %1231
        %v1233 = vsel %vm575, %v1230, %v1232
        %v1237 = vmul.f32 %v1158, %v1230
        %v1238 = vmul.f32 %v1159, %v1233
        %v1239 = vmul.f32 %v1174, %v1232
        %1243 = vrot.lane.b32.xlu0 %v1158, 127
        %v1244 = vpop.permute.xlu0 %1243
        %1245 = vrot.lane.b32.xlu0 %v1159, 127
        %v1246 = vpop.permute.xlu0 %1245
        %1247 = vrot.lane.b32.xlu0 %v1174, 127
        %v1248 = vpop.permute.xlu0 %1247
        %v1249 = vsel %vm688, %v1244, %v1246
        %v1250 = vsel %vm688, %v1246, %v1248
        %1256 = vrot.lane.b32.xlu0 %v1193, 126
        %v1257 = vpop.permute.xlu0 %1256
        %1258 = vrot.lane.b32.xlu0 %v1194, 126
        %v1259 = vpop.permute.xlu0 %1258
        %1260 = vrot.lane.b32.xlu0 %v1195, 126
        %v1261 = vpop.permute.xlu0 %1260
        %v1262 = vsel %vm702, %v1257, %v1259
        %v1263 = vsel %vm702, %v1259, %v1261
        %1269 = vrot.lane.b32.xlu0 %v1204, 112
        %v1270 = vpop.permute.xlu0 %1269
        %1271 = vrot.lane.b32.xlu0 %v1205, 112
        %v1272 = vpop.permute.xlu0 %1271
        %1273 = vrot.lane.b32.xlu0 %v1206, 112
        %v1274 = vpop.permute.xlu0 %1273
        %v1275 = vsel %vm716, %v1270, %v1272
        %v1276 = vsel %vm716, %v1272, %v1274
        %1279 = vrot.lane.b32.xlu0 %v1158, 111
        %v1280 = vpop.permute.xlu0 %1279
        %1281 = vrot.lane.b32.xlu0 %v1159, 111
        %v1282 = vpop.permute.xlu0 %1281
        %1283 = vrot.lane.b32.xlu0 %v1174, 111
        %v1284 = vpop.permute.xlu0 %1283
        %v1285 = vsel %vm727, %v1280, %v1282
        %v1286 = vsel %vm727, %v1282, %v1284
        %1292 = vrot.lane.b32.xlu0 %v1215, 110
        %v1293 = vpop.permute.xlu0 %1292
        %1294 = vrot.lane.b32.xlu0 %v1216, 110
        %v1295 = vpop.permute.xlu0 %1294
        %1296 = vrot.lane.b32.xlu0 %v1217, 110
        %v1297 = vpop.permute.xlu0 %1296
        %v1298 = vsel %vm741, %v1293, %v1295
        %v1299 = vsel %vm741, %v1295, %v1297
        %1305 = vrot.lane.b32.xlu0 %v1226, 96
        %v1306 = vpop.permute.xlu0 %1305
        %1307 = vrot.lane.b32.xlu0 %v1227, 96
        %v1308 = vpop.permute.xlu0 %1307
        %1309 = vrot.lane.b32.xlu0 %v1228, 96
        %v1310 = vpop.permute.xlu0 %1309
        %v1311 = vsel %vm755, %v1306, %v1308
        %v1312 = vsel %vm755, %v1308, %v1310
        %1315 = vrot.lane.b32.xlu0 %v1158, 95
        %v1316 = vpop.permute.xlu0 %1315
        %1317 = vrot.lane.b32.xlu0 %v1159, 95
        %v1318 = vpop.permute.xlu0 %1317
        %1319 = vrot.lane.b32.xlu0 %v1174, 95
        %v1320 = vpop.permute.xlu0 %1319
        %v1321 = vsel %vm766, %v1316, %v1318
        %v1322 = vsel %vm766, %v1318, %v1320
        %1328 = vrot.lane.b32.xlu0 %v1237, 94
        %v1329 = vpop.permute.xlu0 %1328
        %1330 = vrot.lane.b32.xlu0 %v1238, 94
        %v1331 = vpop.permute.xlu0 %1330
        %1332 = vrot.lane.b32.xlu0 %v1239, 94
        %v1333 = vpop.permute.xlu0 %1332
        %v1334 = vsel %vm780, %v1329, %v1331
        %v1335 = vsel %vm780, %v1331, %v1333
        %v1338 = vld [vmem:[%s9] sm:$0xff]
        %v1339 = vld [vmem:[%s9 + $0x8] sm:$0xff]
        %v1341 = vsel %vm792, %v1338, 0
        %v1344 = vsel %vm792, %v1339, 0
        %1346 = vmatprep.subr.mxu0 %v1173
        %1347 = vmatpush1.msra.mxu0 %v1172
        %1348 = vmatprep.subr.mxu0 %v1250
        %1349 = vmatpush1.msra.mxu0 %v1249
        %1350 = vmatprep.subr.mxu0 %v1263
        %1351 = vmatpush1.msra.mxu0 %v1262
        %1352 = vmatprep.subr.mxu0 %v1276
        %1353 = vmatpush1.msra.mxu0 %v1275
        %1354 = vmatprep.subr.mxu0 %v1286
        %1355 = vmatpush1.msra.mxu0 %v1285
        %1356 = vmatprep.subr.mxu0 %v1299
        %1357 = vmatpush1.msra.mxu0 %v1298
        %1358 = vmatprep.subr.mxu0 %v1312
        %1359 = vmatpush1.msra.mxu0 %v1311
        %1360 = vmatprep.subr.mxu0 %v1322
        %1361 = vmatpush1.msra.mxu0 %v1321
        %1362 = vmatprep.subr.mxu0 %v1335
        %1363 = vmatpush1.msra.mxu0 %v1334
        %1364 = vmatprep.subr.mxu0 0.0
        %1365 = vmatpush1.msra.mxu0 0.0
        %1366 = vmatprep.subr.mxu0 0.0
        %1367 = vmatpush1.msra.mxu0 0.0
        %1368 = vmatprep.subr.mxu0 0.0
        %1369 = vmatpush1.msra.mxu0 0.0
        %1370 = vmatprep.subr.mxu0 0.0
        %1371 = vmatpush1.msra.mxu0 0.0
        %1372 = vmatprep.subr.mxu0 0.0
        %1373 = vmatpush1.msra.mxu0 0.0
        %1374 = vmatprep.subr.mxu0 0.0
        %1375 = vmatpush1.msra.mxu0 0.0
        %1376 = vmatprep.subr.mxu0 0.0
        %1377 = vmatpush1.msra.mxu0 0.0
        %1378 = vmatprep.subr.mxu0 0.0
        %1379 = vmatpush1.msra.mxu0 0.0
        %1380 = vmatprep.subr.mxu0 0.0
        %1381 = vmatpush1.msra.mxu0 0.0
        %1382 = vmatprep.subr.mxu0 0.0
        %1383 = vmatpush1.msra.mxu0 0.0
        %1384 = vmatprep.subr.mxu0 0.0
        %1385 = vmatpush1.msra.mxu0 0.0
        %1386 = vmatprep.subr.mxu0 0.0
        %1387 = vmatpush1.msra.mxu0 0.0
        %1388 = vmatprep.subr.mxu0 0.0
        %1389 = vmatpush1.msra.mxu0 0.0
        %1390 = vmatprep.subr.mxu0 0.0
        %1391 = vmatpush1.msra.mxu0 0.0
        %1392 = vmatprep.subr.mxu0 0.0
        %1393 = vmatpush1.msra.mxu0 0.0
        %1394 = vmatprep.subr.mxu0 0.0
        %1395 = vmatpush1.msra.mxu0 0.0
        %1396 = vmatprep.subr.mxu0 0.0
        %1397 = vmatpush1.msra.mxu0 0.0
        %1398 = vmatprep.subr.mxu0 0.0
        %1399 = vmatpush1.msra.mxu0 0.0
        %1400 = vmatprep.subr.mxu0 0.0
        %1401 = vmatpush1.msra.mxu0 0.0
        %1402 = vmatprep.subr.mxu0 0.0
        %1403 = vmatpush1.msra.mxu0 0.0
        %1404 = vmatprep.subr.mxu0 0.0
        %1405 = vmatpush1.msra.mxu0 0.0
        %1406 = vmatprep.subr.mxu0 0.0
        %1407 = vmatpush1.msra.mxu0 0.0
        %1408 = vmatprep.subr.mxu0 0.0
        %1409 = vmatpush1.msra.mxu0 0.0
        %1410 = vmatprep.mubr.f32.mxu0 0.0
        %1411 = vmatmul.mubr.f32.gmra.mrb[0].mxu0 %v1341
        %v1412 = vpop.f32.mrb[0].mxu0
        %v1413 = vadd.f32 0.0, %v1412
        %v1414 = vpop.f32.mrb[0].mxu0
        %v1415 = vadd.f32 0.0, %v1414
        %1416 = vmatprep.mubr.f32.mxu0 0.0
        %1417 = vmatmul.mubr.f32.gmra.mrb[0].mxu0 %v1344
        %v1418 = vpop.f32.mrb[0].mxu0
        %v1419 = vadd.f32 0.0, %v1418
        %v1420 = vpop.f32.mrb[0].mxu0
        %v1421 = vadd.f32 0.0, %v1420
        %1422 = vdwg.mxu0
        %v1423 = vld [vmem:[#allocation7] sm:$0xff]
        %v1424 = vld [vmem:[#allocation7 + $0x8] sm:$0xff]
        %v1425 = vld [vmem:[#allocation7 + $0x10] sm:$0xff]
        %v1426 = vld [vmem:[#allocation7 + $0x18] sm:$0xff]
        %v1427 = vld [vmem:[#allocation7 + $0x20] sm:$0xff]
        %v1428 = vld [vmem:[#allocation7 + $0x28] sm:$0xff]
        %v1429 = vld [vmem:[#allocation7 + $0x30] sm:$0xff]
        %v1430 = vld [vmem:[#allocation7 + $0x38] sm:$0xff]
        %v1431 = vld [vmem:[#allocation7 + $0x40] sm:$0xff]
        %v1432 = vld [vmem:[#allocation7 + $0x48] sm:$0xff]
        %v1433 = vld [vmem:[#allocation7 + $0x50] sm:$0xff]
        %v1434 = vld [vmem:[#allocation7 + $0x58] sm:$0xff]
        %v1435 = vld [vmem:[#allocation7 + $0x60] sm:$0xff]
        %v1436 = vld [vmem:[#allocation7 + $0x68] sm:$0xff]
        %v1437 = vld [vmem:[#allocation7 + $0x70] sm:$0xff]
        %v1438 = vld [vmem:[#allocation7 + $0x78] sm:$0xff]
        %v1439 = vld [vmem:[#allocation7 + $0x80] sm:$0xff]
        %v1440 = vld [vmem:[#allocation7 + $0x88] sm:$0xff]
        %v1441 = vld [vmem:[#allocation7 + $0x90] sm:$0xff]
        %v1442 = vld [vmem:[#allocation7 + $0x98] sm:$0xff]
        %v1443 = vld [vmem:[#allocation7 + $0xa0] sm:$0xff]
        %v1444 = vld [vmem:[#allocation7 + $0xa8] sm:$0xff]
        %v1445 = vld [vmem:[#allocation7 + $0xb0] sm:$0xff]
        %v1446 = vld [vmem:[#allocation7 + $0xb8] sm:$0xff]
        %v1447 = vld [vmem:[#allocation7 + $0xc0] sm:$0xff]
        %v1448 = vld [vmem:[#allocation7 + $0xc8] sm:$0xff]
        %v1449 = vld [vmem:[#allocation7 + $0xd0] sm:$0xff]
        %v1450 = vld [vmem:[#allocation7 + $0xd8] sm:$0xff]
        %v1451 = vld [vmem:[#allocation7 + $0xe0] sm:$0xff]
        %v1452 = vld [vmem:[#allocation7 + $0xe8] sm:$0xff]
        %v1453 = vld [vmem:[#allocation7 + $0xf0] sm:$0xff]
        %v1454 = vld [vmem:[#allocation7 + $0xf8] sm:$0xff]
        %v1455 = vld [vmem:[%s10] sm:$0xff]
        %v1456 = vld [vmem:[%s10 + $0x8] sm:$0xff]
        %1458 = vset.pattern.permute.xlu0 0
        %1459 = vperm.xlu0 %1458, %v1455
        %v1460 = vpop.permute.xlu0 %1459
        %1463 = vset.pattern.permute.xlu0 0
        %1464 = vperm.xlu0 %1463, %v1456
        %v1465 = vpop.permute.xlu0 %1464
        %1467 = vmatprep.subr.mxu0 0.0
        %1468 = vmatpush1.msra.mxu0 %v1423
        %1469 = vmatprep.subr.mxu0 0.0
        %1470 = vmatpush1.msra.mxu0 %v1424
        %1471 = vmatprep.subr.mxu0 0.0
        %1472 = vmatpush1.msra.mxu0 %v1425
        %1473 = vmatprep.subr.mxu0 0.0
        %1474 = vmatpush1.msra.mxu0 %v1426
        %1475 = vmatprep.subr.mxu0 0.0
        %1476 = vmatpush1.msra.mxu0 %v1427
        %1477 = vmatprep.subr.mxu0 0.0
        %1478 = vmatpush1.msra.mxu0 %v1428
        %1479 = vmatprep.subr.mxu0 0.0
        %1480 = vmatpush1.msra.mxu0 %v1429
        %1481 = vmatprep.subr.mxu0 0.0
        %1482 = vmatpush1.msra.mxu0 %v1430
        %1483 = vmatprep.subr.mxu0 0.0
        %1484 = vmatpush1.msra.mxu0 %v1431
        %1485 = vmatprep.subr.mxu0 0.0
        %1486 = vmatpush1.msra.mxu0 %v1432
        %1487 = vmatprep.subr.mxu0 0.0
        %1488 = vmatpush1.msra.mxu0 %v1433
        %1489 = vmatprep.subr.mxu0 0.0
        %1490 = vmatpush1.msra.mxu0 %v1434
        %1491 = vmatprep.subr.mxu0 0.0
        %1492 = vmatpush1.msra.mxu0 %v1435
        %1493 = vmatprep.subr.mxu0 0.0
        %1494 = vmatpush1.msra.mxu0 %v1436
        %1495 = vmatprep.subr.mxu0 0.0
        %1496 = vmatpush1.msra.mxu0 %v1437
        %1497 = vmatprep.subr.mxu0 0.0
        %1498 = vmatpush1.msra.mxu0 %v1438
        %1499 = vmatprep.subr.mxu0 0.0
        %1500 = vmatpush1.msra.mxu0 %v1439
        %1501 = vmatprep.subr.mxu0 0.0
        %1502 = vmatpush1.msra.mxu0 %v1440
        %1503 = vmatprep.subr.mxu0 0.0
        %1504 = vmatpush1.msra.mxu0 %v1441
        %1505 = vmatprep.subr.mxu0 0.0
        %1506 = vmatpush1.msra.mxu0 %v1442
        %1507 = vmatprep.subr.mxu0 0.0
        %1508 = vmatpush1.msra.mxu0 %v1443
        %1509 = vmatprep.subr.mxu0 0.0
        %1510 = vmatpush1.msra.mxu0 %v1444
        %1511 = vmatprep.subr.mxu0 0.0
        %1512 = vmatpush1.msra.mxu0 %v1445
        %1513 = vmatprep.subr.mxu0 0.0
        %1514 = vmatpush1.msra.mxu0 %v1446
        %1515 = vmatprep.subr.mxu0 0.0
        %1516 = vmatpush1.msra.mxu0 %v1447
        %1517 = vmatprep.subr.mxu0 0.0
        %1518 = vmatpush1.msra.mxu0 %v1448
        %1519 = vmatprep.subr.mxu0 0.0
        %1520 = vmatpush1.msra.mxu0 %v1449
        %1521 = vmatprep.subr.mxu0 0.0
        %1522 = vmatpush1.msra.mxu0 %v1450
        %1523 = vmatprep.subr.mxu0 0.0
        %1524 = vmatpush1.msra.mxu0 %v1451
        %1525 = vmatprep.subr.mxu0 0.0
        %1526 = vmatpush1.msra.mxu0 %v1452
        %1527 = vmatprep.subr.mxu0 0.0
        %1528 = vmatpush1.msra.mxu0 %v1453
        %1529 = vmatprep.subr.mxu0 0.0
        %1530 = vmatpush1.msra.mxu0 %v1454
        %1531 = vmatprep.mubr.f32.mxu0 %v1415
        %1532 = vmatmul.mubr.f32.gmra.mrb[0].mxu0 %v1413
        %v1533 = vpop.f32.mrb[0].mxu0
        %v1534 = vadd.f32 %v1460, %v1533
        %v1535 = vpop.f32.mrb[0].mxu0
        %1536 = vmatprep.mubr.f32.mxu0 %v1421
        %1537 = vmatmul.mubr.f32.gmra.mrb[0].mxu0 %v1419
        %v1538 = vpop.f32.mrb[0].mxu0
        %v1539 = vadd.f32 %v1465, %v1538
        %v1540 = vpop.f32.mrb[0].mxu0
        %1541 = vdwg.mxu0
        %v1542 = vmax.f32 %v1534, 0.0
        %v1543 = vmax.f32 %v1539, 0.0
        %vm1544 = vcmask 523264
        %1545 = vst.msk [vmem:[%s565] sm:$0xff] %vm1544, %v1542
        %1546 = vst.msk [vmem:[%s565 + $0x8] sm:$0xff] %vm1544, %v1543
        %vm1547 = vcmask 670720
        %1548 = vst.msk [vmem:[#allocation2] sm:$0xff] %vm1547, 0.0
        %1549 = vst.msk [vmem:[#allocation2 + $0x18] sm:$0xff] %vm1547, 0.0
        %1552 = vrot.lane.b32.xlu0 %v1542, 9
        %v1553 = vpop.permute.xlu0 %1552
        %1554 = vrot.lane.b32.xlu0 %v1543, 9
        %v1555 = vpop.permute.xlu0 %1554
        %vm1558 = vcmask 597064
        %1559 = vst.msk [vmem:[#allocation2] sm:$0xff] %vm1558, %v1553
        %1560 = vst.msk [vmem:[#allocation2 + $0x18] sm:$0xff] %vm1558, %v1555
        %v1561 = vld [vmem:[#allocation2] sm:$0xff]
        %v1562 = vld [vmem:[#allocation2 + $0x18] sm:$0xff]
        %v1563 = vld [vmem:[#allocation5] sm:$0x1]
        %v1564 = vlaneseq
        %v1565 = vshrl.u32 %v1564, 7
        %v1566 = vsub.s32 0, %v1565
        %v1567 = vrot.slane %v1563, %v1566
        %v1568 = vmul.f32 %v1561, %v1567
        %v1569 = vmul.f32 %v1562, %v1567
        %v1570 = vld [vmem:[#allocation5 + $0x1] sm:$0x1]
        %v1571 = vlaneseq
        %v1572 = vshrl.u32 %v1571, 7
        %v1573 = vsub.s32 0, %v1572
        %v1574 = vrot.slane %v1570, %v1573
        %1576 = vrot.lane.b32.xlu0 %v1574, 2
        %v1577 = vpop.permute.xlu0 %1576
        %v1579 = vmul.f32 %v1561, %v1577
        %v1580 = vmul.f32 %v1562, %v1577
        %1582 = vrot.lane.b32.xlu0 %v1567, 8
        %v1583 = vpop.permute.xlu0 %1582
        %v1585 = vmul.f32 %v1561, %v1583
        %v1586 = vmul.f32 %v1562, %v1583
        %1587 = vrot.lane.b32.xlu0 %v1574, 10
        %v1588 = vpop.permute.xlu0 %1587
        %v1590 = vmul.f32 %v1561, %v1588
        %v1591 = vmul.f32 %v1562, %v1588
        %1592 = vrot.lane.b32.xlu0 %v1567, 16
        %v1593 = vpop.permute.xlu0 %1592
        %v1595 = vmul.f32 %v1561, %v1593
        %v1596 = vmul.f32 %v1562, %v1593
        %1597 = vrot.lane.b32.xlu0 %v1574, 18
        %v1598 = vpop.permute.xlu0 %1597
        %v1600 = vmul.f32 %v1561, %v1598
        %v1601 = vmul.f32 %v1562, %v1598
        %1604 = vrot.lane.b32.xlu0 %v1561, 127
        %v1605 = vpop.permute.xlu0 %1604
        %1606 = vrot.lane.b32.xlu0 %v1562, 127
        %v1607 = vpop.permute.xlu0 %1606
        %1612 = vrot.lane.b32.xlu0 %v1579, 126
        %v1613 = vpop.permute.xlu0 %1612
        %1614 = vrot.lane.b32.xlu0 %v1580, 126
        %v1615 = vpop.permute.xlu0 %1614
        %1620 = vrot.lane.b32.xlu0 %v1585, 120
        %v1621 = vpop.permute.xlu0 %1620
        %1622 = vrot.lane.b32.xlu0 %v1586, 120
        %v1623 = vpop.permute.xlu0 %1622
        %1626 = vrot.lane.b32.xlu0 %v1561, 119
        %v1627 = vpop.permute.xlu0 %1626
        %1628 = vrot.lane.b32.xlu0 %v1562, 119
        %v1629 = vpop.permute.xlu0 %1628
        %1634 = vrot.lane.b32.xlu0 %v1590, 118
        %v1635 = vpop.permute.xlu0 %1634
        %1636 = vrot.lane.b32.xlu0 %v1591, 118
        %v1637 = vpop.permute.xlu0 %1636
        %1642 = vrot.lane.b32.xlu0 %v1595, 112
        %v1643 = vpop.permute.xlu0 %1642
        %1644 = vrot.lane.b32.xlu0 %v1596, 112
        %v1645 = vpop.permute.xlu0 %1644
        %1648 = vrot.lane.b32.xlu0 %v1561, 111
        %v1649 = vpop.permute.xlu0 %1648
        %1650 = vrot.lane.b32.xlu0 %v1562, 111
        %v1651 = vpop.permute.xlu0 %1650
        %1656 = vrot.lane.b32.xlu0 %v1600, 110
        %v1657 = vpop.permute.xlu0 %1656
        %1658 = vrot.lane.b32.xlu0 %v1601, 110
        %v1659 = vpop.permute.xlu0 %1658
        %v1662 = vld [vmem:[%s11] sm:$0xff]
        %v1663 = vld [vmem:[%s11 + $0x8] sm:$0xff]
        %v1664 = vld [vmem:[%s11 + $0x10] sm:$0xff]
        %v1665 = vld [vmem:[%s11 + $0x18] sm:$0xff]
        %v1666 = vld [vmem:[%s11 + $0x20] sm:$0xff]
        %v1667 = vld [vmem:[%s11 + $0x28] sm:$0xff]
        %v1668 = vld [vmem:[%s11 + $0x30] sm:$0xff]
        %v1669 = vld [vmem:[%s11 + $0x38] sm:$0xff]
        %v1671 = vsel %vm636, %v1663, 0
        %v1674 = vsel %vm636, %v1665, 0
        %v1677 = vsel %vm636, %v1667, 0
        %v1680 = vsel %vm636, %v1669, 0
        %1682 = vmatprep.subr.mxu0 0.0
        %1683 = vmatpush1.msra.mxu0 %v1568
        %1684 = vmatprep.subr.mxu0 0.0
        %1685 = vmatpush1.msra.mxu0 %v1569
        %1686 = vmatprep.subr.mxu0 0.0
        %1687 = vmatpush1.msra.mxu0 %v1605
        %1688 = vmatprep.subr.mxu0 0.0
        %1689 = vmatpush1.msra.mxu0 %v1607
        %1690 = vmatprep.subr.mxu0 0.0
        %1691 = vmatpush1.msra.mxu0 %v1613
        %1692 = vmatprep.subr.mxu0 0.0
        %1693 = vmatpush1.msra.mxu0 %v1615
        %1694 = vmatprep.subr.mxu0 0.0
        %1695 = vmatpush1.msra.mxu0 %v1621
        %1696 = vmatprep.subr.mxu0 0.0
        %1697 = vmatpush1.msra.mxu0 %v1623
        %1698 = vmatprep.subr.mxu0 0.0
        %1699 = vmatpush1.msra.mxu0 %v1627
        %1700 = vmatprep.subr.mxu0 0.0
        %1701 = vmatpush1.msra.mxu0 %v1629
        %1702 = vmatprep.subr.mxu0 0.0
        %1703 = vmatpush1.msra.mxu0 %v1635
        %1704 = vmatprep.subr.mxu0 0.0
        %1705 = vmatpush1.msra.mxu0 %v1637
        %1706 = vmatprep.subr.mxu0 0.0
        %1707 = vmatpush1.msra.mxu0 %v1643
        %1708 = vmatprep.subr.mxu0 0.0
        %1709 = vmatpush1.msra.mxu0 %v1645
        %1710 = vmatprep.subr.mxu0 0.0
        %1711 = vmatpush1.msra.mxu0 %v1649
        %1712 = vmatprep.subr.mxu0 0.0
        %1713 = vmatpush1.msra.mxu0 %v1651
        %1714 = vmatprep.subr.mxu0 0.0
        %1715 = vmatpush1.msra.mxu0 %v1657
        %1716 = vmatprep.subr.mxu0 0.0
        %1717 = vmatpush1.msra.mxu0 %v1659
        %1718 = vmatprep.subr.mxu0 0.0
        %1719 = vmatpush1.msra.mxu0 0.0
        %1720 = vmatprep.subr.mxu0 0.0
        %1721 = vmatpush1.msra.mxu0 0.0
        %1722 = vmatprep.subr.mxu0 0.0
        %1723 = vmatpush1.msra.mxu0 0.0
        %1724 = vmatprep.subr.mxu0 0.0
        %1725 = vmatpush1.msra.mxu0 0.0
        %1726 = vmatprep.subr.mxu0 0.0
        %1727 = vmatpush1.msra.mxu0 0.0
        %1728 = vmatprep.subr.mxu0 0.0
        %1729 = vmatpush1.msra.mxu0 0.0
        %1730 = vmatprep.subr.mxu0 0.0
        %1731 = vmatpush1.msra.mxu0 0.0
        %1732 = vmatprep.subr.mxu0 0.0
        %1733 = vmatpush1.msra.mxu0 0.0
        %1734 = vmatprep.subr.mxu0 0.0
        %1735 = vmatpush1.msra.mxu0 0.0
        %1736 = vmatprep.subr.mxu0 0.0
        %1737 = vmatpush1.msra.mxu0 0.0
        %1738 = vmatprep.subr.mxu0 0.0
        %1739 = vmatpush1.msra.mxu0 0.0
        %1740 = vmatprep.subr.mxu0 0.0
        %1741 = vmatpush1.msra.mxu0 0.0
        %1742 = vmatprep.subr.mxu0 0.0
        %1743 = vmatpush1.msra.mxu0 0.0
        %1744 = vmatprep.subr.mxu0 0.0
        %1745 = vmatpush1.msra.mxu0 0.0
        %1746 = vmatprep.mubr.f32.mxu0 %v1671
        %1747 = vmatmul.mubr.f32.gmra.mrb[0].mxu0 %v1662
        %v1748 = vpop.f32.mrb[0].mxu0
        %v1749 = vadd.f32 0.0, %v1748
        %v1750 = vpop.f32.mrb[0].mxu0
        %1751 = vmatprep.mubr.f32.mxu0 %v1674
        %1752 = vmatmul.mubr.f32.gmra.mrb[0].mxu0 %v1664
        %v1753 = vpop.f32.mrb[0].mxu0
        %v1754 = vadd.f32 0.0, %v1753
        %v1755 = vpop.f32.mrb[0].mxu0
        %1756 = vmatprep.mubr.f32.mxu0 %v1677
        %1757 = vmatmul.mubr.f32.gmra.mrb[0].mxu0 %v1666
        %v1758 = vpop.f32.mrb[0].mxu0
        %v1759 = vadd.f32 0.0, %v1758
        %v1760 = vpop.f32.mrb[0].mxu0
        %1761 = vmatprep.mubr.f32.mxu0 %v1680
        %1762 = vmatmul.mubr.f32.gmra.mrb[0].mxu0 %v1668
        %v1763 = vpop.f32.mrb[0].mxu0
        %v1764 = vadd.f32 0.0, %v1763
        %v1765 = vpop.f32.mrb[0].mxu0
        %1766 = vdwg.mxu0
        %v1767 = vld [vmem:[%s4] sm:$0xff]
        %v1768 = vld [vmem:[%s4 + $0x8] sm:$0xff]
        %v1769 = vld [vmem:[%s4 + $0x10] sm:$0xff]
        %v1770 = vld [vmem:[%s4 + $0x18] sm:$0xff]
        %v1771 = vld [vmem:[%s4 + $0x20] sm:$0xff]
        %v1772 = vld [vmem:[%s4 + $0x28] sm:$0xff]
        %v1773 = vld [vmem:[%s4 + $0x30] sm:$0xff]
        %v1774 = vld [vmem:[%s4 + $0x38] sm:$0xff]
        %v1775 = vld [vmem:[%s12] sm:$0xff]
        %v1776 = vld [vmem:[%s12 + $0x8] sm:$0xff]
        %v1777 = vld [vmem:[%s12 + $0x10] sm:$0xff]
        %v1778 = vld [vmem:[%s12 + $0x18] sm:$0xff]
        %1780 = vset.pattern.permute.xlu0 0
        %1781 = vperm.xlu0 %1780, %v1775
        %v1782 = vpop.permute.xlu0 %1781
        %1785 = vset.pattern.permute.xlu0 0
        %1786 = vperm.xlu0 %1785, %v1776
        %v1787 = vpop.permute.xlu0 %1786
        %1790 = vset.pattern.permute.xlu0 0
        %1791 = vperm.xlu0 %1790, %v1777
        %v1792 = vpop.permute.xlu0 %1791
        %1795 = vset.pattern.permute.xlu0 0
        %1796 = vperm.xlu0 %1795, %v1778
        %v1797 = vpop.permute.xlu0 %1796
        %v1800 = vsel %vm1544, %v1749, 0
        %v1803 = vsel %vm1544, %v1754, 0
        %v1806 = vsel %vm1544, %v1759, 0
        %v1809 = vsel %vm1544, %v1764, 0
        %1811 = vmatprep.subr.mxu0 0.0
        %1812 = vmatpush1.msra.mxu0 %v1767
        %1813 = vmatprep.subr.mxu0 0.0
        %1814 = vmatpush1.msra.mxu0 %v1768
        %1815 = vmatprep.subr.mxu0 0.0
        %1816 = vmatpush1.msra.mxu0 %v1769
        %1817 = vmatprep.subr.mxu0 0.0
        %1818 = vmatpush1.msra.mxu0 %v1770
        %1819 = vmatprep.subr.mxu0 0.0
        %1820 = vmatpush1.msra.mxu0 %v1771
        %1821 = vmatprep.subr.mxu0 0.0
        %1822 = vmatpush1.msra.mxu0 %v1772
        %1823 = vmatprep.subr.mxu0 0.0
        %1824 = vmatpush1.msra.mxu0 %v1773
        %1825 = vmatprep.subr.mxu0 0.0
        %1826 = vmatpush1.msra.mxu0 %v1774
        %1827 = vmatprep.subr.mxu0 0.0
        %1828 = vmatpush1.msra.mxu0 0.0
        %1829 = vmatprep.subr.mxu0 0.0
        %1830 = vmatpush1.msra.mxu0 0.0
        %1831 = vmatprep.subr.mxu0 0.0
        %1832 = vmatpush1.msra.mxu0 0.0
        %1833 = vmatprep.subr.mxu0 0.0
        %1834 = vmatpush1.msra.mxu0 0.0
        %1835 = vmatprep.subr.mxu0 0.0
        %1836 = vmatpush1.msra.mxu0 0.0
        %1837 = vmatprep.subr.mxu0 0.0
        %1838 = vmatpush1.msra.mxu0 0.0
        %1839 = vmatprep.subr.mxu0 0.0
        %1840 = vmatpush1.msra.mxu0 0.0
        %1841 = vmatprep.subr.mxu0 0.0
        %1842 = vmatpush1.msra.mxu0 0.0
        %1843 = vmatprep.subr.mxu0 0.0
        %1844 = vmatpush1.msra.mxu0 0.0
        %1845 = vmatprep.subr.mxu0 0.0
        %1846 = vmatpush1.msra.mxu0 0.0
        %1847 = vmatprep.subr.mxu0 0.0
        %1848 = vmatpush1.msra.mxu0 0.0
        %1849 = vmatprep.subr.mxu0 0.0
        %1850 = vmatpush1.msra.mxu0 0.0
        %1851 = vmatprep.subr.mxu0 0.0
        %1852 = vmatpush1.msra.mxu0 0.0
        %1853 = vmatprep.subr.mxu0 0.0
        %1854 = vmatpush1.msra.mxu0 0.0
        %1855 = vmatprep.subr.mxu0 0.0
        %1856 = vmatpush1.msra.mxu0 0.0
        %1857 = vmatprep.subr.mxu0 0.0
        %1858 = vmatpush1.msra.mxu0 0.0
        %1859 = vmatprep.subr.mxu0 0.0
        %1860 = vmatpush1.msra.mxu0 0.0
        %1861 = vmatprep.subr.mxu0 0.0
        %1862 = vmatpush1.msra.mxu0 0.0
        %1863 = vmatprep.subr.mxu0 0.0
        %1864 = vmatpush1.msra.mxu0 0.0
        %1865 = vmatprep.subr.mxu0 0.0
        %1866 = vmatpush1.msra.mxu0 0.0
        %1867 = vmatprep.subr.mxu0 0.0
        %1868 = vmatpush1.msra.mxu0 0.0
        %1869 = vmatprep.subr.mxu0 0.0
        %1870 = vmatpush1.msra.mxu0 0.0
        %1871 = vmatprep.subr.mxu0 0.0
        %1872 = vmatpush1.msra.mxu0 0.0
        %1873 = vmatprep.subr.mxu0 0.0
        %1874 = vmatpush1.msra.mxu0 0.0
        %1875 = vmatprep.mubr.f32.mxu0 0.0
        %1876 = vmatmul.mubr.f32.gmra.mrb[0].mxu0 %v1800
        %v1877 = vpop.f32.mrb[0].mxu0
        %v1878 = vadd.f32 %v1782, %v1877
        %v1879 = vpop.f32.mrb[0].mxu0
        %1880 = vmatprep.mubr.f32.mxu0 0.0
        %1881 = vmatmul.mubr.f32.gmra.mrb[0].mxu0 %v1803
        %v1882 = vpop.f32.mrb[0].mxu0
        %v1883 = vadd.f32 %v1787, %v1882
        %v1884 = vpop.f32.mrb[0].mxu0
        %1885 = vmatprep.mubr.f32.mxu0 0.0
        %1886 = vmatmul.mubr.f32.gmra.mrb[0].mxu0 %v1806
        %v1887 = vpop.f32.mrb[0].mxu0
        %v1888 = vadd.f32 %v1792, %v1887
        %v1889 = vpop.f32.mrb[0].mxu0
        %1890 = vmatprep.mubr.f32.mxu0 0.0
        %1891 = vmatmul.mubr.f32.gmra.mrb[0].mxu0 %v1809
        %v1892 = vpop.f32.mrb[0].mxu0
        %v1893 = vadd.f32 %v1797, %v1892
        %v1894 = vpop.f32.mrb[0].mxu0
        %1895 = vdwg.mxu0
        %v1896 = vmax.f32 %v1878, 0.0
        %v1897 = vmax.f32 %v1883, 0.0
        %v1898 = vmax.f32 %v1888, 0.0
        %v1899 = vmax.f32 %v1893, 0.0
        %1900 = vst.msk [vmem:[%s570] sm:$0xff] %vm636, %v1896
        %1901 = vst.msk [vmem:[%s570 + $0x8] sm:$0xff] %vm636, %v1897
        %1902 = vst.msk [vmem:[%s570 + $0x10] sm:$0xff] %vm636, %v1898
        %1903 = vst.msk [vmem:[%s570 + $0x18] sm:$0xff] %vm636, %v1899
        %p1904 = scmp.lt.s32.totalorder %s30, 1
        %s1905 = scalar_select %p1904, %s30, 1
        %s1906 = smul.addr %s1905, 2
        %s1907 = smul.addr %s1906, 8
        %s1908 = scalar_lea.vmem %s13, %s1907
        %p1909 = scmp.lt.s32.totalorder %s30, 1
        %s1910 = scalar_select %p1909, %s30, 1
        %s1911 = smul.addr %s1910, 4
        %s1912 = smul.addr %s1911, 8
        %s1913 = scalar_lea.vmem %s14, %s1912
        // Predicated region
        $region101: #{_forward_impl.1} parent=71 // pred_check
          %p1914 = pneg %p326
        $region102: #{_forward_impl.1} parent=71 // pred_check_branch
          %1916 = sbr.rel (%p1914) target = $region104
        $region103: #{_forward_impl.1} parent=71 // pred_region
          _
        $region104: #{_forward_impl.1} parent=71 // pred_fallthru
          _
        // Predicated region
        $region105: #{_forward_impl.1} parent=71 // pred_check
          %p1917 = pneg %p352
        $region106: #{_forward_impl.1} parent=71 // pred_check_branch
          %1919 = sbr.rel (%p1917) target = $region108
        $region107: #{_forward_impl.1} parent=71 // pred_region
          _
        $region108: #{_forward_impl.1} parent=71 // pred_fallthru
          _
      $region72: #{_forward_impl.1} parent=5 // pred_fallthru
        _
      %p1920 = scmp.le.s32.totalorder 2, %s25
      // Predicated region
      $region109: #{_forward_impl.1} parent=5 // pred_check
        %p1921 = pneg %p1920
      $region110: #{_forward_impl.1} parent=5 // pred_check_branch
        %1923 = sbr.rel (%p1921) target = $region112
      $region111: #{_forward_impl.1} parent=5 // pred_region
        %s1924 = ssub.s32 %s25, 2
        // Predicated region
        $region113: #{_forward_impl.1} parent=111 // pred_check
          %p1925 = pneg %p332
        $region114: #{_forward_impl.1} parent=111 // pred_check_branch
          %1927 = sbr.rel (%p1925) target = $region116
        $region115: #{_forward_impl.1} parent=111 // pred_region
          %p1928 = scmp.lt.s32.totalorder %s31, 1
          %s1929 = scalar_select %p1928, %s31, 1
          %s1930 = smul.addr %s1929, 2
          %s1931 = smul.addr %s1930, 8
          %s1932 = scalar_lea.vmem %s13, %s1931
        $region116: #{_forward_impl.1} parent=111 // pred_fallthru
          _
        // Predicated region
        $region117: #{_forward_impl.1} parent=111 // pred_check
          %p1933 = pneg %p358
        $region118: #{_forward_impl.1} parent=111 // pred_check_branch
          %1935 = sbr.rel (%p1933) target = $region120
        $region119: #{_forward_impl.1} parent=111 // pred_region
          %p1936 = scmp.lt.s32.totalorder %s31, 1
          %s1937 = scalar_select %p1936, %s31, 1
          %s1938 = smul.addr %s1937, 4
          %s1939 = smul.addr %s1938, 8
          %s1940 = scalar_lea.vmem %s14, %s1939
        $region120: #{_forward_impl.1} parent=111 // pred_fallthru
          _
      $region112: #{_forward_impl.1} parent=5 // pred_fallthru
        _
    $region6: #{_forward_impl.1} parent=1 // loop_footer
      %s29 = sadd.s32 1, %s25
    $region7: #{_forward_impl.1} parent=1 // loop_footer_branch
      %24 = sbr.rel target = $region3
    $region8: #{_forward_impl.1} parent=1 // loop_exit
      _
    %1941 = vsyncpa [#allocation4], 1
    %s1942 = scalar_lea.sflag [#allocation4], 1
    %1943 = vsyncpa %s1942, 1
    %1944 = vsyncpa [#allocation6], 1
    %1945 = vsyncpa [#allocation9], 1
    %1946 = vsyncpa [#allocation12], 1

</llo_original>
